<compile_context>
chip_gen: v6e
topology: v6e:2x2x1
jax: 0.10.0
libtpu: 0.0.40
codegen_flags: <defaults>
</compile_context>

<pallas_src>
import functools

import jax
import jax.numpy as jnp
from jax.experimental import pallas as pl
from jax.experimental.pallas import tpu as pltpu


def _cdiv(a, b):
    return -(-a // b)


def _round_up(n, m):
    return _cdiv(n, m) * m


def _vmem_capacity_bytes():
    """Per-TensorCore VMEM capacity; conservative 64 MiB (v7x) fallback."""
    try:
        cap = getattr(pltpu.get_tpu_info(), "vmem_capacity_bytes", None)
        if cap:
            return int(cap)
    except Exception:
        pass
    return 64 << 20


def _tile_vmem_bytes(tb, nI, nN, nO):
    """Per-grid-step VMEM footprint for the buffering scheme used below."""
    return (2 * tb * nI * 2                    # x tile (bf16), double-buffered
            + 2 * tb * nO * 4                  # x_e tile (f32), double-buffered
            + 2 * tb * nI * 2                  # x_de tile (bf16), double-buffered
            + 2 * (nN * nI + nO * nN) * 2      # W1/W1^T/W2/W2^T (bf16), single-buffered
            + (nI + 2 * nN + nO) * 4           # biases (f32), single-buffered
            + tb * nN * 2)                     # h scratch (bf16)


def _pick_batch_tile(B, block_b, nI, nN, nO, vmem_budget):
    """Pick the batch tile TB and the number of row sub-tiles per grid step.

    Keeps the last tile mostly full (bounded padding waste), gives the
    batch-parallel grid >= 2 steps whenever B allows (v7x megacore), and
    shrinks TB until the per-step VMEM footprint fits the chip budget.
    """
    n_tiles = _cdiv(B, block_b)
    if n_tiles < 2 and B >= 16:
        n_tiles = 2
    TB = _round_up(_cdiv(B, n_tiles), 8)
    if TB >= 16:
        TB = _round_up(TB, 16)                 # splits into 2 equal sub-tiles
    while TB > 16 and _tile_vmem_bytes(TB, nI, nN, nO) > vmem_budget:
        TB = _round_up(TB // 2, 16)
    n_sub = 2 if TB % 16 == 0 else 1
    return TB, n_sub


def _make_kernel(n_sub, sub_rows):
    def kernel(x_ref, w1t_ref, w1_ref, w2t_ref, w2_ref,
               b1_ref, b2_ref, bd1_ref, bd2_ref,
               xe_ref, xde_ref, h_ref):
        """One batch tile of the full encoder+decoder chain.

        x_ref   : [TB, nI]  bf16   padded input tile
        w1t_ref : [nI, nN]  bf16   W1^T (resident, single-buffered)
        w1_ref  : [nN, nI]  bf16   W1   (resident, single-buffered)
        w2t_ref : [nN, nO]  bf16   W2^T (resident, single-buffered)
        w2_ref  : [nO, nN]  bf16   W2   (resident, single-buffered)
        b*_ref  : [1, n]    f32    biases (broadcast rows)
        xe_ref  : [TB, nO]  f32    encoder output
        xde_ref : [TB, nI]  bf16   decoder output (upcast outside)
        h_ref   : [n_sub, SUB, nN] bf16 scratch, one slot per sub-tile
        """
        w1t = w1t_ref[...]
        w1 = w1_ref[...]
        w2t = w2t_ref[...]
        w2 = w2_ref[...]
        b1 = b1_ref[...]
        b2 = b2_ref[...]
        bd1 = bd1_ref[...]
        bd2 = bd2_ref[...]

        # Unrolled row sub-tiles: the MXU work of sub-tile k overlaps the
        # VPU/EUP epilogue (bias + ReLU / tanh + casts) of sub-tile k-1.
        for k in range(n_sub):
            rows = pl.ds(k * sub_rows, sub_rows)
            x = x_ref[rows, :]

            # ---- Encoder: linear1 -> ReLU ----
            h1 = jnp.dot(x, w1t, preferred_element_type=jnp.float32)
            h1 = jnp.maximum(h1 + b1, 0.0)
            h_ref[k] = h1.astype(jnp.bfloat16)

            # ---- Encoder: linear2 -> ReLU ----
            xe = jnp.dot(h_ref[k], w2t, preferred_element_type=jnp.float32)
            xe = jnp.maximum(xe + b2, 0.0)
            xe_ref[rows, :] = xe

            # ---- Decoder 1 (tied): x_e @ W2 + biasDecoder2 -> ReLU ----
            d1 = jnp.dot(xe.astype(jnp.bfloat16), w2,
                         preferred_element_type=jnp.float32)
            d1 = jnp.maximum(d1 + bd2, 0.0)
            h_ref[k] = d1.astype(jnp.bfloat16)

            # ---- Decoder 2 (tied): d1 @ W1 + biasDecoder1 -> Sigmoid ----
            d2 = jnp.dot(h_ref[k], w1, preferred_element_type=jnp.float32)
            d2 = d2 + bd1
            # sigmoid(x) == 0.5 * tanh(0.5 * x) + 0.5  (single EUP op)
            xde_ref[rows, :] = (0.5 * jnp.tanh(0.5 * d2) + 0.5).astype(xde_ref.dtype)

    return kernel


def pad_params(w1, b1, w2, b2, bd1, bd2):
    """One-time pad/cast of the DEC_AE parameters (hoisted out of the forward
    path so it is not an HBM round trip on every call).

    Returns (padded_param_tuple, (nInput, nNodes, nOutput))."""
    nNodes, nInput = w1.shape
    nOutput = w2.shape[0]
    nI = _round_up(nInput, 128)
    nN = _round_up(nNodes, 128)
    nO = _round_up(nOutput, 128)
    bf16, f32 = jnp.bfloat16, jnp.float32

    w1p = jnp.zeros((nN, nI), bf16).at[:nNodes, :nInput].set(w1.astype(bf16))
    w2p = jnp.zeros((nO, nN), bf16).at[:nOutput, :nNodes].set(w2.astype(bf16))
    # Pre-transposed copies so every in-kernel matmul is a canonical
    # (((1,),(0,))) contraction (no in-kernel transpose of the weights).
    w1tp = jnp.transpose(w1p)          # [nI, nN]
    w2tp = jnp.transpose(w2p)          # [nN, nO]

    b1p = jnp.zeros((1, nN), f32).at[0, :nNodes].set(b1.astype(f32))
    b2p = jnp.zeros((1, nO), f32).at[0, :nOutput].set(b2.astype(f32))
    bd1p = jnp.zeros((1, nI), f32).at[0, :nInput].set(bd1.astype(f32))
    bd2p = jnp.zeros((1, nN), f32).at[0, :nNodes].set(bd2.astype(f32))

    padded = (w1p, w1tp, w2p, w2tp, b1p, b2p, bd1p, bd2p)
    return padded, (nInput, nNodes, nOutput)


def _forward_impl(x, padded, dims, block_b, single_buffer_weights):
    w1p, w1tp, w2p, w2tp, b1p, b2p, bd1p, bd2p = padded
    nInput, nNodes, nOutput = dims
    B = x.shape[0]
    assert x.shape[1] == nInput
    nN, nI = w1p.shape
    nO = w2p.shape[0]

    bf16, f32 = jnp.bfloat16, jnp.float32

    vmem_cap = _vmem_capacity_bytes()
    vmem_budget = (vmem_cap * 15) // 16          # leave a sliver for the compiler
    TB, n_sub = _pick_batch_tile(B, block_b, nI, nN, nO, vmem_budget)
    SUB = TB // n_sub
    Bp = _round_up(B, TB)
    grid = (Bp // TB,)

    # Only the activation is padded/cast per call; parameters were padded once.
    xp = jnp.zeros((Bp, nI), bf16).at[:B, :nInput].set(x.astype(bf16))

    spec_kwargs = {}
    if single_buffer_weights and hasattr(pl, "Buffered"):
        # Loop-invariant operands: one VMEM buffer is enough (halves their
        # VMEM footprint vs. default double-buffering).
        spec_kwargs["pipeline_mode"] = pl.Buffered(1)

    def batch_spec(cols):
        return pl.BlockSpec((TB, cols), lambda i: (i, 0))

    def const_spec(shape):
        return pl.BlockSpec(shape, lambda i: (0, 0), **spec_kwargs)

    # Advisory cost estimate for XLA's scheduler.
    flops = 4 * Bp * (nI * nN + nN * nO)
    bytes_accessed = (Bp * nI * 2                       # x in (bf16)
                      + 2 * (nN * nI + nO * nN) * 2     # weights (bf16)
                      + (nI + 2 * nN + nO) * 4          # biases (f32)
                      + Bp * nO * 4                     # x_e out (f32)
                      + Bp * nI * 2)                    # x_de out (bf16)
    cost = pl.CostEstimate(flops=flops, transcendentals=Bp * nI,
                           bytes_accessed=bytes_accessed)

    tile_bytes = _tile_vmem_bytes(TB, nI, nN, nO)
    vmem_limit = int(min(vmem_budget, max(tile_bytes + (4 << 20), 16 << 20)))

    xe_p, xde_p = pl.pallas_call(
        _make_kernel(n_sub, SUB),
        out_shape=(
            jax.ShapeDtypeStruct((Bp, nO), f32),     # x_e  (padded)
            jax.ShapeDtypeStruct((Bp, nI), bf16),    # x_de (padded, bf16 writeback)
        ),
        grid_spec=pltpu.PrefetchScalarGridSpec(
            num_scalar_prefetch=0,
            grid=grid,
            in_specs=[
                batch_spec(nI),             # x
                const_spec((nI, nN)),       # W1^T (resident)
                const_spec((nN, nI)),       # W1   (resident)
                const_spec((nN, nO)),       # W2^T (resident)
                const_spec((nO, nN)),       # W2   (resident)
                const_spec((1, nN)),        # b1
                const_spec((1, nO)),        # b2
                const_spec((1, nI)),        # biasDecoder1
                const_spec((1, nN)),        # biasDecoder2
            ],
            out_specs=[
                batch_spec(nO),
                batch_spec(nI),
            ],
            scratch_shapes=[pltpu.VMEM((n_sub, SUB, nN), bf16)],
        ),
        compiler_params=pltpu.CompilerParams(
            dimension_semantics=("parallel",),   # shard batch tiles across TCs
            vmem_limit_bytes=vmem_limit),
        cost_estimate=cost,
    )(xp, w1tp, w1p, w2tp, w2p, b1p, b2p, bd1p, bd2p)

    # Slice off lane/batch padding; upcast the bf16 decoder output.
    return xe_p[:B, :nOutput], xde_p[:B, :nInput].astype(f32)


@functools.partial(jax.jit,
                   static_argnames=("dims", "block_b", "single_buffer_weights"))
def dec_ae_forward(x, padded, dims, block_b=512, single_buffer_weights=True):
    """Pallas DEC_AE forward (pretrain mode).

    x: [B, nInput] f32; `padded`/`dims` from pad_params(). Returns (x_e, x_de) f32."""
    return _forward_impl(x, padded, dims, block_b, single_buffer_weights)


def xavier_uniform(key, shape):
    """Matches torch.nn.init.xavier_uniform_ for a Linear weight [out, in]."""
    fan_out, fan_in = shape
    limit = (6.0 / (fan_in + fan_out)) ** 0.5
    return jax.random.uniform(key, shape, jnp.float32, -limit, limit)


def reference_f32(x, w1, b1, w2, b2, bd1, bd2):
    """Pure-JAX f32 reference of the PyTorch forward (pretrain mode)."""
    h1 = jnp.maximum(x @ w1.T + b1, 0.0)
    xe = jnp.maximum(h1 @ w2.T + b2, 0.0)
    d1 = jnp.maximum(xe @ w2 + bd2, 0.0)
    xde = jax.nn.sigmoid(d1 @ w1 + bd1)
    return xe, xde


def reference_bf16(x, w1, b1, w2, b2, bd1, bd2):
    """Reference mirroring the kernel's bf16-matmul / f32-accumulate math
    (including the bf16 writeback of x_de)."""
    bf, f32 = jnp.bfloat16, jnp.float32
    xb, w1b, w2b = x.astype(bf), w1.astype(bf), w2.astype(bf)
    h1 = jnp.maximum(jnp.dot(xb, w1b.T, preferred_element_type=f32) + b1, 0.0)
    xe = jnp.maximum(jnp.dot(h1.astype(bf), w2b.T,
                             preferred_element_type=f32) + b2, 0.0)
    d1 = jnp.maximum(jnp.dot(xe.astype(bf), w2b,
                             preferred_element_type=f32) + bd2, 0.0)
    d2 = jnp.dot(d1.astype(bf), w1b, preferred_element_type=f32) + bd1
    xde = jax.nn.sigmoid(d2).astype(bf).astype(f32)
    return xe, xde


if __name__ == "__main__":
    # Small shapes consistent with the module: DEC_AE(nInput, nNodes, nOutput)
    B, nInput, nNodes, nOutput = 8, 64, 32, 16

    key = jax.random.PRNGKey(0)
    k_x, k_w1, k_w2 = jax.random.split(key, 3)

    x = jax.random.normal(k_x, (B, nInput), jnp.float32)

    # Deterministic parameter init mirroring DEC_AE.__init__:
    w1 = xavier_uniform(k_w1, (nNodes, nInput))   # linear1.weight
    b1 = jnp.zeros((nNodes,), jnp.float32)        # linear1.bias (zeroed)
    w2 = xavier_uniform(k_w2, (nOutput, nNodes))  # linear2.weight
    b2 = jnp.zeros((nOutput,), jnp.float32)       # linear2.bias (zeroed)
    bd1 = jnp.zeros((nInput,), jnp.float32)       # biasDecoder1
    bd2 = jnp.zeros((nNodes,), jnp.float32)       # biasDecoder2

    # One-time parameter padding/cast (hoisted out of the forward path).
    padded, dims = pad_params(w1, b1, w2, b2, bd1, bd2)

    try:
        x_e, x_de = dec_ae_forward(x, padded, dims=dims)
        jax.block_until_ready((x_e, x_de))
    except Exception:
        # Fallback for jax versions without BlockSpec pipeline_mode support.
        x_e, x_de = dec_ae_forward(x, padded, dims=dims,
                                   single_buffer_weights=False)
        jax.block_until_ready((x_e, x_de))

    assert x_e.shape == (B, nOutput) and x_de.shape == (B, nInput)

    # Tight check against a reference using the same bf16-matmul / bf16-store math.
    ref_xe_bf, ref_xde_bf = reference_bf16(x, w1, b1, w2, b2, bd1, bd2)
    assert jnp.allclose(x_e, ref_xe_bf, atol=2e-3, rtol=2e-3)
    assert jnp.allclose(x_de, ref_xde_bf, atol=1e-2, rtol=1e-2)

    # Loose semantic check against the full-f32 PyTorch-equivalent math
    # (difference is only bf16 matmul-operand / x_de-store rounding).
    ref_xe, ref_xde = reference_f32(x, w1, b1, w2, b2, bd1, bd2)
    assert jnp.allclose(x_e, ref_xe, atol=5e-2, rtol=5e-2)
    assert jnp.allclose(x_de, ref_xde, atol=5e-2, rtol=5e-2)

    print("KERNEL_OK")
</pallas_src>

<mosaic_0001>
module attributes {stable_mosaic.version = 11 : i64} {
  func.func @kernel(%arg0: i32, %arg1: memref<8x128xbf16, #tpu.memory_space<vmem>>, %arg2: memref<128x128xbf16, #tpu.memory_space<vmem>>, %arg3: memref<128x128xbf16, #tpu.memory_space<vmem>>, %arg4: memref<128x128xbf16, #tpu.memory_space<vmem>>, %arg5: memref<128x128xbf16, #tpu.memory_space<vmem>>, %arg6: memref<1x128xf32, #tpu.memory_space<vmem>>, %arg7: memref<1x128xf32, #tpu.memory_space<vmem>>, %arg8: memref<1x128xf32, #tpu.memory_space<vmem>>, %arg9: memref<1x128xf32, #tpu.memory_space<vmem>>, %arg10: memref<8x128xf32, #tpu.memory_space<vmem>>, %arg11: memref<8x128xbf16, #tpu.memory_space<vmem>>, %arg12: memref<1x8x128xbf16, #tpu.memory_space<vmem>>) attributes {dimension_semantics = [#tpu.dimension_semantics<parallel>], iteration_bounds = array<i64: 1>, scalar_prefetch = 0 : i64, scratch_operands = 1 : i64, tpu.core_type = #tpu.core_type<tc>, window_params = [{transform_indices = @transform_0, window_bounds = array<i64: 8, 128>}, {pipeline_mode = #tpu.pipeline_mode<synchronous>, transform_indices = @transform_1, window_bounds = array<i64: 128, 128>}, {pipeline_mode = #tpu.pipeline_mode<synchronous>, transform_indices = @transform_2, window_bounds = array<i64: 128, 128>}, {pipeline_mode = #tpu.pipeline_mode<synchronous>, transform_indices = @transform_3, window_bounds = array<i64: 128, 128>}, {pipeline_mode = #tpu.pipeline_mode<synchronous>, transform_indices = @transform_4, window_bounds = array<i64: 128, 128>}, {pipeline_mode = #tpu.pipeline_mode<synchronous>, transform_indices = @transform_5, window_bounds = array<i64: 1, 128>}, {pipeline_mode = #tpu.pipeline_mode<synchronous>, transform_indices = @transform_6, window_bounds = array<i64: 1, 128>}, {pipeline_mode = #tpu.pipeline_mode<synchronous>, transform_indices = @transform_7, window_bounds = array<i64: 1, 128>}, {pipeline_mode = #tpu.pipeline_mode<synchronous>, transform_indices = @transform_8, window_bounds = array<i64: 1, 128>}, {transform_indices = @transform_9, window_bounds = array<i64: 8, 128>}, {transform_indices = @transform_10, window_bounds = array<i64: 8, 128>}]} {
    %c0 = arith.constant 0 : index
    %c0_0 = arith.constant 0 : index
    %0 = vector.load %arg2[%c0, %c0_0] : memref<128x128xbf16, #tpu.memory_space<vmem>>, vector<128x128xbf16>
    %c0_1 = arith.constant 0 : index
    %c0_2 = arith.constant 0 : index
    %1 = vector.load %arg3[%c0_1, %c0_2] : memref<128x128xbf16, #tpu.memory_space<vmem>>, vector<128x128xbf16>
    %c0_3 = arith.constant 0 : index
    %c0_4 = arith.constant 0 : index
    %2 = vector.load %arg4[%c0_3, %c0_4] : memref<128x128xbf16, #tpu.memory_space<vmem>>, vector<128x128xbf16>
    %c0_5 = arith.constant 0 : index
    %c0_6 = arith.constant 0 : index
    %3 = vector.load %arg5[%c0_5, %c0_6] : memref<128x128xbf16, #tpu.memory_space<vmem>>, vector<128x128xbf16>
    %c0_7 = arith.constant 0 : index
    %c0_8 = arith.constant 0 : index
    %4 = vector.load %arg6[%c0_7, %c0_8] : memref<1x128xf32, #tpu.memory_space<vmem>>, vector<1x128xf32>
    %c0_9 = arith.constant 0 : index
    %c0_10 = arith.constant 0 : index
    %5 = vector.load %arg7[%c0_9, %c0_10] : memref<1x128xf32, #tpu.memory_space<vmem>>, vector<1x128xf32>
    %c0_11 = arith.constant 0 : index
    %c0_12 = arith.constant 0 : index
    %6 = vector.load %arg8[%c0_11, %c0_12] : memref<1x128xf32, #tpu.memory_space<vmem>>, vector<1x128xf32>
    %c0_13 = arith.constant 0 : index
    %c0_14 = arith.constant 0 : index
    %7 = vector.load %arg9[%c0_13, %c0_14] : memref<1x128xf32, #tpu.memory_space<vmem>>, vector<1x128xf32>
    %c0_15 = arith.constant 0 : index
    %c0_16 = arith.constant 0 : index
    %8 = vector.load %arg1[%c0_15, %c0_16] : memref<8x128xbf16, #tpu.memory_space<vmem>>, vector<8x128xbf16>
    %cst = arith.constant dense<0.000000e+00> : vector<8x128xf32>
    %9 = tpu.matmul %8, %0, %cst {dimension_numbers = #tpu.dot_dimension_numbers<[1], [0], [0], [1], [0, 0, 1, 1], [], []>} : vector<8x128xbf16>, vector<128x128xbf16>, vector<8x128xf32> -> vector<8x128xf32>
    %10 = vector.broadcast %4 : vector<1x128xf32> to vector<8x128xf32>
    %11 = arith.addf %9, %10 : vector<8x128xf32>
    %cst_17 = arith.constant 0.000000e+00 : f32
    %12 = vector.broadcast %cst_17 : f32 to vector<8x128xf32>
    %13 = arith.maximumf %11, %12 : vector<8x128xf32>
    %14 = arith.truncf %13 : vector<8x128xf32> to vector<8x128xbf16>
    %c0_18 = arith.constant 0 : index
    %c0_19 = arith.constant 0 : index
    %c0_20 = arith.constant 0 : index
    %15 = vector.load %arg12[%c0_18, %c0_19, %c0_20] : memref<1x8x128xbf16, #tpu.memory_space<vmem>>, vector<1x8x128xbf16>
    %16 = vector.shape_cast %15 : vector<1x8x128xbf16> to vector<8x128xbf16>
    %17 = vector.shape_cast %14 : vector<8x128xbf16> to vector<1x8x128xbf16>
    tpu.vector_store %arg12[%c0_18, %c0_19, %c0_20], %17 {strides = array<i32>} : memref<1x8x128xbf16, #tpu.memory_space<vmem>>, vector<1x8x128xbf16>,
    %c0_21 = arith.constant 0 : index
    %c0_22 = arith.constant 0 : index
    %c0_23 = arith.constant 0 : index
    %18 = vector.load %arg12[%c0_21, %c0_22, %c0_23] : memref<1x8x128xbf16, #tpu.memory_space<vmem>>, vector<1x8x128xbf16>
    %19 = vector.shape_cast %18 : vector<1x8x128xbf16> to vector<8x128xbf16>
    %cst_24 = arith.constant dense<0.000000e+00> : vector<8x128xf32>
    %20 = tpu.matmul %19, %2, %cst_24 {dimension_numbers = #tpu.dot_dimension_numbers<[1], [0], [0], [1], [0, 0, 1, 1], [], []>} : vector<8x128xbf16>, vector<128x128xbf16>, vector<8x128xf32> -> vector<8x128xf32>
    %21 = vector.broadcast %5 : vector<1x128xf32> to vector<8x128xf32>
    %22 = arith.addf %20, %21 : vector<8x128xf32>
    %cst_25 = arith.constant 0.000000e+00 : f32
    %23 = vector.broadcast %cst_25 : f32 to vector<8x128xf32>
    %24 = arith.maximumf %22, %23 : vector<8x128xf32>
    %c0_26 = arith.constant 0 : index
    %c0_27 = arith.constant 0 : index
    %25 = vector.load %arg10[%c0_26, %c0_27] : memref<8x128xf32, #tpu.memory_space<vmem>>, vector<8x128xf32>
    tpu.vector_store %arg10[%c0_26, %c0_27], %24 {strides = array<i32>} : memref<8x128xf32, #tpu.memory_space<vmem>>, vector<8x128xf32>,
    %26 = arith.truncf %24 : vector<8x128xf32> to vector<8x128xbf16>
    %cst_28 = arith.constant dense<0.000000e+00> : vector<8x128xf32>
    %27 = tpu.matmul %26, %3, %cst_28 {dimension_numbers = #tpu.dot_dimension_numbers<[1], [0], [0], [1], [0, 0, 1, 1], [], []>} : vector<8x128xbf16>, vector<128x128xbf16>, vector<8x128xf32> -> vector<8x128xf32>
    %28 = vector.broadcast %7 : vector<1x128xf32> to vector<8x128xf32>
    %29 = arith.addf %27, %28 : vector<8x128xf32>
    %cst_29 = arith.constant 0.000000e+00 : f32
    %30 = vector.broadcast %cst_29 : f32 to vector<8x128xf32>
    %31 = arith.maximumf %29, %30 : vector<8x128xf32>
    %32 = arith.truncf %31 : vector<8x128xf32> to vector<8x128xbf16>
    %c0_30 = arith.constant 0 : index
    %c0_31 = arith.constant 0 : index
    %c0_32 = arith.constant 0 : index
    %33 = vector.load %arg12[%c0_30, %c0_31, %c0_32] : memref<1x8x128xbf16, #tpu.memory_space<vmem>>, vector<1x8x128xbf16>
    %34 = vector.shape_cast %33 : vector<1x8x128xbf16> to vector<8x128xbf16>
    %35 = vector.shape_cast %32 : vector<8x128xbf16> to vector<1x8x128xbf16>
    tpu.vector_store %arg12[%c0_30, %c0_31, %c0_32], %35 {strides = array<i32>} : memref<1x8x128xbf16, #tpu.memory_space<vmem>>, vector<1x8x128xbf16>,
    %c0_33 = arith.constant 0 : index
    %c0_34 = arith.constant 0 : index
    %c0_35 = arith.constant 0 : index
    %36 = vector.load %arg12[%c0_33, %c0_34, %c0_35] : memref<1x8x128xbf16, #tpu.memory_space<vmem>>, vector<1x8x128xbf16>
    %37 = vector.shape_cast %36 : vector<1x8x128xbf16> to vector<8x128xbf16>
    %cst_36 = arith.constant dense<0.000000e+00> : vector<8x128xf32>
    %38 = tpu.matmul %37, %1, %cst_36 {dimension_numbers = #tpu.dot_dimension_numbers<[1], [0], [0], [1], [0, 0, 1, 1], [], []>} : vector<8x128xbf16>, vector<128x128xbf16>, vector<8x128xf32> -> vector<8x128xf32>
    %39 = vector.broadcast %6 : vector<1x128xf32> to vector<8x128xf32>
    %40 = arith.addf %38, %39 : vector<8x128xf32>
    %cst_37 = arith.constant 5.000000e-01 : f32
    %41 = vector.broadcast %cst_37 : f32 to vector<8x128xf32>
    %42 = arith.mulf %41, %40 : vector<8x128xf32>
    %43 = math.tanh %42 : vector<8x128xf32>
    %cst_38 = arith.constant 5.000000e-01 : f32
    %44 = vector.broadcast %cst_38 : f32 to vector<8x128xf32>
    %45 = arith.mulf %44, %43 : vector<8x128xf32>
    %cst_39 = arith.constant 5.000000e-01 : f32
    %46 = vector.broadcast %cst_39 : f32 to vector<8x128xf32>
    %47 = arith.addf %45, %46 : vector<8x128xf32>
    %48 = arith.truncf %47 : vector<8x128xf32> to vector<8x128xbf16>
    %c0_40 = arith.constant 0 : index
    %c0_41 = arith.constant 0 : index
    %49 = vector.load %arg11[%c0_40, %c0_41] : memref<8x128xbf16, #tpu.memory_space<vmem>>, vector<8x128xbf16>
    tpu.vector_store %arg11[%c0_40, %c0_41], %48 {strides = array<i32>} : memref<8x128xbf16, #tpu.memory_space<vmem>>, vector<8x128xbf16>,
    return
  }
  func.func @transform_0(%arg0: i32) -> (i32, i32) {
    %c0_i32 = arith.constant 0 : i32
    %c0_i32_0 = arith.constant 0 : i32
    return %arg0, %c0_i32 : i32, i32
  }
  func.func @transform_1(%arg0: i32) -> (i32, i32) {
    %c0_i32 = arith.constant 0 : i32
    %c0_i32_0 = arith.constant 0 : i32
    %c0_i32_1 = arith.constant 0 : i32
    return %c0_i32, %c0_i32_0 : i32, i32
  }
  func.func @transform_2(%arg0: i32) -> (i32, i32) {
    %c0_i32 = arith.constant 0 : i32
    %c0_i32_0 = arith.constant 0 : i32
    %c0_i32_1 = arith.constant 0 : i32
    return %c0_i32, %c0_i32_0 : i32, i32
  }
  func.func @transform_3(%arg0: i32) -> (i32, i32) {
    %c0_i32 = arith.constant 0 : i32
    %c0_i32_0 = arith.constant 0 : i32
    %c0_i32_1 = arith.constant 0 : i32
    return %c0_i32, %c0_i32_0 : i32, i32
  }
  func.func @transform_4(%arg0: i32) -> (i32, i32) {
    %c0_i32 = arith.constant 0 : i32
    %c0_i32_0 = arith.constant 0 : i32
    %c0_i32_1 = arith.constant 0 : i32
    return %c0_i32, %c0_i32_0 : i32, i32
  }
  func.func @transform_5(%arg0: i32) -> (i32, i32) {
    %c0_i32 = arith.constant 0 : i32
    %c0_i32_0 = arith.constant 0 : i32
    %c0_i32_1 = arith.constant 0 : i32
    return %c0_i32, %c0_i32_0 : i32, i32
  }
  func.func @transform_6(%arg0: i32) -> (i32, i32) {
    %c0_i32 = arith.constant 0 : i32
    %c0_i32_0 = arith.constant 0 : i32
    %c0_i32_1 = arith.constant 0 : i32
    return %c0_i32, %c0_i32_0 : i32, i32
  }
  func.func @transform_7(%arg0: i32) -> (i32, i32) {
    %c0_i32 = arith.constant 0 : i32
    %c0_i32_0 = arith.constant 0 : i32
    %c0_i32_1 = arith.constant 0 : i32
    return %c0_i32, %c0_i32_0 : i32, i32
  }
  func.func @transform_8(%arg0: i32) -> (i32, i32) {
    %c0_i32 = arith.constant 0 : i32
    %c0_i32_0 = arith.constant 0 : i32
    %c0_i32_1 = arith.constant 0 : i32
    return %c0_i32, %c0_i32_0 : i32, i32
  }
  func.func @transform_9(%arg0: i32) -> (i32, i32) {
    %c0_i32 = arith.constant 0 : i32
    %c0_i32_0 = arith.constant 0 : i32
    return %arg0, %c0_i32 : i32, i32
  }
  func.func @transform_10(%arg0: i32) -> (i32, i32) {
    %c0_i32 = arith.constant 0 : i32
    %c0_i32_0 = arith.constant 0 : i32
    return %arg0, %c0_i32 : i32, i32
  }
}

module attributes {stable_mosaic.version = 11 : i64} {
  func.func @kernel(%arg0: i32, %arg1: memref<8x128xbf16, #tpu.memory_space<vmem>>, %arg2: memref<128x128xbf16, #tpu.memory_space<vmem>>, %arg3: memref<128x128xbf16, #tpu.memory_space<vmem>>, %arg4: memref<128x128xbf16, #tpu.memory_space<vmem>>, %arg5: memref<128x128xbf16, #tpu.memory_space<vmem>>, %arg6: memref<1x128xf32, #tpu.memory_space<vmem>>, %arg7: memref<1x128xf32, #tpu.memory_space<vmem>>, %arg8: memref<1x128xf32, #tpu.memory_space<vmem>>, %arg9: memref<1x128xf32, #tpu.memory_space<vmem>>, %arg10: memref<8x128xf32, #tpu.memory_space<vmem>>, %arg11: memref<8x128xbf16, #tpu.memory_space<vmem>>, %arg12: memref<1x8x128xbf16, #tpu.memory_space<vmem>>) attributes {dimension_semantics = [#tpu.dimension_semantics<parallel>], iteration_bounds = array<i64: 1>, scalar_prefetch = 0 : i64, scratch_operands = 1 : i64, tpu.core_type = #tpu.core_type<tc>, window_params = [{transform_indices = @transform_0, window_bounds = array<i64: 8, 128>}, {pipeline_mode = #tpu.pipeline_mode<synchronous>, transform_indices = @transform_1, window_bounds = array<i64: 128, 128>}, {pipeline_mode = #tpu.pipeline_mode<synchronous>, transform_indices = @transform_2, window_bounds = array<i64: 128, 128>}, {pipeline_mode = #tpu.pipeline_mode<synchronous>, transform_indices = @transform_3, window_bounds = array<i64: 128, 128>}, {pipeline_mode = #tpu.pipeline_mode<synchronous>, transform_indices = @transform_4, window_bounds = array<i64: 128, 128>}, {pipeline_mode = #tpu.pipeline_mode<synchronous>, transform_indices = @transform_5, window_bounds = array<i64: 1, 128>}, {pipeline_mode = #tpu.pipeline_mode<synchronous>, transform_indices = @transform_6, window_bounds = array<i64: 1, 128>}, {pipeline_mode = #tpu.pipeline_mode<synchronous>, transform_indices = @transform_7, window_bounds = array<i64: 1, 128>}, {pipeline_mode = #tpu.pipeline_mode<synchronous>, transform_indices = @transform_8, window_bounds = array<i64: 1, 128>}, {transform_indices = @transform_9, window_bounds = array<i64: 8, 128>}, {transform_indices = @transform_10, window_bounds = array<i64: 8, 128>}]} {
    %c0 = arith.constant 0 : index
    %c0_0 = arith.constant 0 : index
    %0 = vector.load %arg2[%c0, %c0_0] : memref<128x128xbf16, #tpu.memory_space<vmem>>, vector<128x128xbf16>
    %c0_1 = arith.constant 0 : index
    %c0_2 = arith.constant 0 : index
    %1 = vector.load %arg3[%c0_1, %c0_2] : memref<128x128xbf16, #tpu.memory_space<vmem>>, vector<128x128xbf16>
    %c0_3 = arith.constant 0 : index
    %c0_4 = arith.constant 0 : index
    %2 = vector.load %arg4[%c0_3, %c0_4] : memref<128x128xbf16, #tpu.memory_space<vmem>>, vector<128x128xbf16>
    %c0_5 = arith.constant 0 : index
    %c0_6 = arith.constant 0 : index
    %3 = vector.load %arg5[%c0_5, %c0_6] : memref<128x128xbf16, #tpu.memory_space<vmem>>, vector<128x128xbf16>
    %c0_7 = arith.constant 0 : index
    %c0_8 = arith.constant 0 : index
    %4 = vector.load %arg6[%c0_7, %c0_8] : memref<1x128xf32, #tpu.memory_space<vmem>>, vector<1x128xf32>
    %c0_9 = arith.constant 0 : index
    %c0_10 = arith.constant 0 : index
    %5 = vector.load %arg7[%c0_9, %c0_10] : memref<1x128xf32, #tpu.memory_space<vmem>>, vector<1x128xf32>
    %c0_11 = arith.constant 0 : index
    %c0_12 = arith.constant 0 : index
    %6 = vector.load %arg8[%c0_11, %c0_12] : memref<1x128xf32, #tpu.memory_space<vmem>>, vector<1x128xf32>
    %c0_13 = arith.constant 0 : index
    %c0_14 = arith.constant 0 : index
    %7 = vector.load %arg9[%c0_13, %c0_14] : memref<1x128xf32, #tpu.memory_space<vmem>>, vector<1x128xf32>
    %c0_15 = arith.constant 0 : index
    %c0_16 = arith.constant 0 : index
    %8 = vector.load %arg1[%c0_15, %c0_16] : memref<8x128xbf16, #tpu.memory_space<vmem>>, vector<8x128xbf16>
    %cst = arith.constant dense<0.000000e+00> : vector<8x128xf32>
    %9 = tpu.matmul %8, %0, %cst {dimension_numbers = #tpu.dot_dimension_numbers<[1], [0], [0], [1], [0, 0, 1, 1], [], []>} : vector<8x128xbf16>, vector<128x128xbf16>, vector<8x128xf32> -> vector<8x128xf32>
    %10 = vector.broadcast %4 : vector<1x128xf32> to vector<8x128xf32>
    %11 = arith.addf %9, %10 : vector<8x128xf32>
    %cst_17 = arith.constant 0.000000e+00 : f32
    %12 = vector.broadcast %cst_17 : f32 to vector<8x128xf32>
    %13 = arith.maximumf %11, %12 : vector<8x128xf32>
    %14 = arith.truncf %13 : vector<8x128xf32> to vector<8x128xbf16>
    %c0_18 = arith.constant 0 : index
    %c0_19 = arith.constant 0 : index
    %c0_20 = arith.constant 0 : index
    %15 = vector.load %arg12[%c0_18, %c0_19, %c0_20] : memref<1x8x128xbf16, #tpu.memory_space<vmem>>, vector<1x8x128xbf16>
    %16 = vector.shape_cast %15 : vector<1x8x128xbf16> to vector<8x128xbf16>
    %17 = vector.shape_cast %14 : vector<8x128xbf16> to vector<1x8x128xbf16>
    tpu.vector_store %arg12[%c0_18, %c0_19, %c0_20], %17 {strides = array<i32>} : memref<1x8x128xbf16, #tpu.memory_space<vmem>>, vector<1x8x128xbf16>,
    %c0_21 = arith.constant 0 : index
    %c0_22 = arith.constant 0 : index
    %c0_23 = arith.constant 0 : index
    %18 = vector.load %arg12[%c0_21, %c0_22, %c0_23] : memref<1x8x128xbf16, #tpu.memory_space<vmem>>, vector<1x8x128xbf16>
    %19 = vector.shape_cast %18 : vector<1x8x128xbf16> to vector<8x128xbf16>
    %cst_24 = arith.constant dense<0.000000e+00> : vector<8x128xf32>
    %20 = tpu.matmul %19, %2, %cst_24 {dimension_numbers = #tpu.dot_dimension_numbers<[1], [0], [0], [1], [0, 0, 1, 1], [], []>} : vector<8x128xbf16>, vector<128x128xbf16>, vector<8x128xf32> -> vector<8x128xf32>
    %21 = vector.broadcast %5 : vector<1x128xf32> to vector<8x128xf32>
    %22 = arith.addf %20, %21 : vector<8x128xf32>
    %cst_25 = arith.constant 0.000000e+00 : f32
    %23 = vector.broadcast %cst_25 : f32 to vector<8x128xf32>
    %24 = arith.maximumf %22, %23 : vector<8x128xf32>
    %c0_26 = arith.constant 0 : index
    %c0_27 = arith.constant 0 : index
    %25 = vector.load %arg10[%c0_26, %c0_27] : memref<8x128xf32, #tpu.memory_space<vmem>>, vector<8x128xf32>
    tpu.vector_store %arg10[%c0_26, %c0_27], %24 {strides = array<i32>} : memref<8x128xf32, #tpu.memory_space<vmem>>, vector<8x128xf32>,
    %26 = arith.truncf %24 : vector<8x128xf32> to vector<8x128xbf16>
    %cst_28 = arith.constant dense<0.000000e+00> : vector<8x128xf32>
    %27 = tpu.matmul %26, %3, %cst_28 {dimension_numbers = #tpu.dot_dimension_numbers<[1], [0], [0], [1], [0, 0, 1, 1], [], []>} : vector<8x128xbf16>, vector<128x128xbf16>, vector<8x128xf32> -> vector<8x128xf32>
    %28 = vector.broadcast %7 : vector<1x128xf32> to vector<8x128xf32>
    %29 = arith.addf %27, %28 : vector<8x128xf32>
    %cst_29 = arith.constant 0.000000e+00 : f32
    %30 = vector.broadcast %cst_29 : f32 to vector<8x128xf32>
    %31 = arith.maximumf %29, %30 : vector<8x128xf32>
    %32 = arith.truncf %31 : vector<8x128xf32> to vector<8x128xbf16>
    %c0_30 = arith.constant 0 : index
    %c0_31 = arith.constant 0 : index
    %c0_32 = arith.constant 0 : index
    %33 = vector.load %arg12[%c0_30, %c0_31, %c0_32] : memref<1x8x128xbf16, #tpu.memory_space<vmem>>, vector<1x8x128xbf16>
    %34 = vector.shape_cast %33 : vector<1x8x128xbf16> to vector<8x128xbf16>
    %35 = vector.shape_cast %32 : vector<8x128xbf16> to vector<1x8x128xbf16>
    tpu.vector_store %arg12[%c0_30, %c0_31, %c0_32], %35 {strides = array<i32>} : memref<1x8x128xbf16, #tpu.memory_space<vmem>>, vector<1x8x128xbf16>,
    %c0_33 = arith.constant 0 : index
    %c0_34 = arith.constant 0 : index
    %c0_35 = arith.constant 0 : index
    %36 = vector.load %arg12[%c0_33, %c0_34, %c0_35] : memref<1x8x128xbf16, #tpu.memory_space<vmem>>, vector<1x8x128xbf16>
    %37 = vector.shape_cast %36 : vector<1x8x128xbf16> to vector<8x128xbf16>
    %cst_36 = arith.constant dense<0.000000e+00> : vector<8x128xf32>
    %38 = tpu.matmul %37, %1, %cst_36 {dimension_numbers = #tpu.dot_dimension_numbers<[1], [0], [0], [1], [0, 0, 1, 1], [], []>} : vector<8x128xbf16>, vector<128x128xbf16>, vector<8x128xf32> -> vector<8x128xf32>
    %39 = vector.broadcast %6 : vector<1x128xf32> to vector<8x128xf32>
    %40 = arith.addf %38, %39 : vector<8x128xf32>
    %cst_37 = arith.constant 5.000000e-01 : f32
    %41 = vector.broadcast %cst_37 : f32 to vector<8x128xf32>
    %42 = arith.mulf %41, %40 : vector<8x128xf32>
    %43 = math.tanh %42 : vector<8x128xf32>
    %cst_38 = arith.constant 5.000000e-01 : f32
    %44 = vector.broadcast %cst_38 : f32 to vector<8x128xf32>
    %45 = arith.mulf %44, %43 : vector<8x128xf32>
    %cst_39 = arith.constant 5.000000e-01 : f32
    %46 = vector.broadcast %cst_39 : f32 to vector<8x128xf32>
    %47 = arith.addf %45, %46 : vector<8x128xf32>
    %48 = arith.truncf %47 : vector<8x128xf32> to vector<8x128xbf16>
    %c0_40 = arith.constant 0 : index
    %c0_41 = arith.constant 0 : index
    %49 = vector.load %arg11[%c0_40, %c0_41] : memref<8x128xbf16, #tpu.memory_space<vmem>>, vector<8x128xbf16>
    tpu.vector_store %arg11[%c0_40, %c0_41], %48 {strides = array<i32>} : memref<8x128xbf16, #tpu.memory_space<vmem>>, vector<8x128xbf16>,
    return
  }
  func.func @transform_0(%arg0: i32) -> (i32, i32) {
    %c0_i32 = arith.constant 0 : i32
    %c0_i32_0 = arith.constant 0 : i32
    return %arg0, %c0_i32 : i32, i32
  }
  func.func @transform_1(%arg0: i32) -> (i32, i32) {
    %c0_i32 = arith.constant 0 : i32
    %c0_i32_0 = arith.constant 0 : i32
    %c0_i32_1 = arith.constant 0 : i32
    return %c0_i32, %c0_i32_0 : i32, i32
  }
  func.func @transform_2(%arg0: i32) -> (i32, i32) {
    %c0_i32 = arith.constant 0 : i32
    %c0_i32_0 = arith.constant 0 : i32
    %c0_i32_1 = arith.constant 0 : i32
    return %c0_i32, %c0_i32_0 : i32, i32
  }
  func.func @transform_3(%arg0: i32) -> (i32, i32) {
    %c0_i32 = arith.constant 0 : i32
    %c0_i32_0 = arith.constant 0 : i32
    %c0_i32_1 = arith.constant 0 : i32
    return %c0_i32, %c0_i32_0 : i32, i32
  }
  func.func @transform_4(%arg0: i32) -> (i32, i32) {
    %c0_i32 = arith.constant 0 : i32
    %c0_i32_0 = arith.constant 0 : i32
    %c0_i32_1 = arith.constant 0 : i32
    return %c0_i32, %c0_i32_0 : i32, i32
  }
  func.func @transform_5(%arg0: i32) -> (i32, i32) {
    %c0_i32 = arith.constant 0 : i32
    %c0_i32_0 = arith.constant 0 : i32
    %c0_i32_1 = arith.constant 0 : i32
    return %c0_i32, %c0_i32_0 : i32, i32
  }
  func.func @transform_6(%arg0: i32) -> (i32, i32) {
    %c0_i32 = arith.constant 0 : i32
    %c0_i32_0 = arith.constant 0 : i32
    %c0_i32_1 = arith.constant 0 : i32
    return %c0_i32, %c0_i32_0 : i32, i32
  }
  func.func @transform_7(%arg0: i32) -> (i32, i32) {
    %c0_i32 = arith.constant 0 : i32
    %c0_i32_0 = arith.constant 0 : i32
    %c0_i32_1 = arith.constant 0 : i32
    return %c0_i32, %c0_i32_0 : i32, i32
  }
  func.func @transform_8(%arg0: i32) -> (i32, i32) {
    %c0_i32 = arith.constant 0 : i32
    %c0_i32_0 = arith.constant 0 : i32
    %c0_i32_1 = arith.constant 0 : i32
    return %c0_i32, %c0_i32_0 : i32, i32
  }
  func.func @transform_9(%arg0: i32) -> (i32, i32) {
    %c0_i32 = arith.constant 0 : i32
    %c0_i32_0 = arith.constant 0 : i32
    return %arg0, %c0_i32 : i32, i32
  }
  func.func @transform_10(%arg0: i32) -> (i32, i32) {
    %c0_i32 = arith.constant 0 : i32
    %c0_i32_0 = arith.constant 0 : i32
    return %arg0, %c0_i32 : i32, i32
  }
}

</mosaic_0001>

<llo_original>
// kernel: dec_ae_forward.1
$region0: #{dec_ae_forward.1}
  #allocation0 [shape = 'u32[]', space=smem, size = 0x4, offset = 0x4, fixed_abs, tag = 'smem constant byte address 0x4 - core index']
  #allocation1 [shape = 'u32[144,128]{1,0:T(1,128)}', space=vmem, size = 0x12000, scoped, tag = 'internal scratch']
  #allocation2 [shape = 'bf16[1,8,128]{2,1,0:T(8,128)(2,1)}', space=vmem, size = 0x800, scoped, tag = 'scratch operand']
  %s0 = inlined_call_operand.vmem [shape: bf16[8,128], index: 0, kind: input, shape index: {}]
  %s1 = inlined_call_operand.hbm [shape: bf16[128,128], index: 1, kind: input, shape index: {}]
  %s2 = inlined_call_operand.hbm [shape: bf16[128,128], index: 2, kind: input, shape index: {}]
  %s3 = inlined_call_operand.hbm [shape: bf16[128,128], index: 3, kind: input, shape index: {}]
  %s4 = inlined_call_operand.hbm [shape: bf16[128,128], index: 4, kind: input, shape index: {}]
  %s5 = inlined_call_operand.vmem [shape: f32[1,128], index: 5, kind: input, shape index: {}]
  %s6 = inlined_call_operand.vmem [shape: f32[1,128], index: 6, kind: input, shape index: {}]
  %s7 = inlined_call_operand.vmem [shape: f32[1,128], index: 7, kind: input, shape index: {}]
  %s8 = inlined_call_operand.vmem [shape: f32[1,128], index: 8, kind: input, shape index: {}]
  %s9 = inlined_call_operand.hbm [shape: f32[8,128], index: 9, kind: output, shape index: {0}]
  %s10 = inlined_call_operand.vmem [shape: bf16[8,128], index: 10, kind: output, shape index: {1}]
  %11 = xla_tuple %s9, %s10
  %s12 = sld [smem:[#allocation0]]
  $region70: #{dec_ae_forward.1} parent=0
    _
  %s14 = ssub.s32 1, %s12
  %s15 = scalar_select 0, %s14, %s12
  $region1: #{dec_ae_forward.1} parent=0
    #allocation3 [shape = 'u8[32768]{0}', space=vmem, size = 0x8000, scoped, tag = 'input window, operand 1, single buffered']
    #allocation4 [shape = 's32[1]{0}', space=sflag, size = 0x4, scoped, tag = 'scoped memory for dec_ae_forward.1']
    #allocation5 [shape = 's32[1]{0}', space=sflag, size = 0x4, scoped, tag = 'scoped memory for dec_ae_forward.1']
    #allocation6 [shape = 'u8[32768]{0}', space=vmem, size = 0x8000, scoped, tag = 'input window, operand 2, single buffered']
    #allocation7 [shape = 's32[1]{0}', space=sflag, size = 0x4, scoped, tag = 'scoped memory for dec_ae_forward.1']
    #allocation8 [shape = 'u8[32768]{0}', space=vmem, size = 0x8000, scoped, tag = 'input window, operand 3, single buffered']
    #allocation9 [shape = 'u8[32768]{0}', space=vmem, size = 0x8000, scoped, tag = 'input window, operand 4, single buffered']
    #allocation10 [shape = 's32[1]{0}', space=sflag, size = 0x4, scoped, tag = 'scoped memory for dec_ae_forward.1']
    #allocation11 [shape = 'u8[4096]{0}', space=vmem, size = 0x1000, scoped, tag = 'output window, operand 0, single buffered']
    %16 = vsyncpa [#allocation4], 0
    %17 = vsyncpa [#allocation7], 0
    %18 = vsyncpa [#allocation10], 0
    %19 = vsyncpa [#allocation5], 0
    // Predicated region
    $region2: #{dec_ae_forward.1} parent=1 // pred_check
      _
    $region3: #{dec_ae_forward.1} parent=1 // pred_check_branch
      %21 = sbr.rel (0) target = $region5
    $region4: #{dec_ae_forward.1} parent=1 // pred_region
      _
    $region5: #{dec_ae_forward.1} parent=1 // pred_fallthru
      _
    // Predicated region
    $region6: #{dec_ae_forward.1} parent=1 // pred_check
      _
    $region7: #{dec_ae_forward.1} parent=1 // pred_check_branch
      %23 = sbr.rel (0) target = $region9
    $region8: #{dec_ae_forward.1} parent=1 // pred_region
      %s25 = ssub.s32 1024, 1024
      %26 = vsyncadd [#allocation4], %s25
      %s27 = sshll.u32 [#allocation3], 4
      %s28 = int_to_ptr.vmem [resolvable:$true] %s27
      %33 = dma.hbm_to_vmem [thread:$0]  %s1, 1024, %s28, [#allocation4], 64, 64, 4
    $region9: #{dec_ae_forward.1} parent=1 // pred_fallthru
      _
    // Predicated region
    $region10: #{dec_ae_forward.1} parent=1 // pred_check
      _
    $region11: #{dec_ae_forward.1} parent=1 // pred_check_branch
      %35 = sbr.rel (0) target = $region13
    $region12: #{dec_ae_forward.1} parent=1 // pred_region
      %s37 = ssub.s32 1024, 1024
      %38 = vsyncadd [#allocation7], %s37
      %s39 = sshll.u32 [#allocation6], 4
      %s40 = int_to_ptr.vmem [resolvable:$true] %s39
      %45 = dma.hbm_to_vmem [thread:$0]  %s2, 1024, %s40, [#allocation7], 64, 64, 4
    $region13: #{dec_ae_forward.1} parent=1 // pred_fallthru
      _
    // Predicated region
    $region14: #{dec_ae_forward.1} parent=1 // pred_check
      _
    $region15: #{dec_ae_forward.1} parent=1 // pred_check_branch
      %47 = sbr.rel (0) target = $region17
    $region16: #{dec_ae_forward.1} parent=1 // pred_region
      %s49 = ssub.s32 1024, 1024
      %50 = vsyncadd [#allocation7], %s49
      %s51 = sshll.u32 [#allocation8], 4
      %s52 = int_to_ptr.vmem [resolvable:$true] %s51
      %57 = dma.hbm_to_vmem [thread:$0]  %s3, 1024, %s52, [#allocation7], 64, 64, 4
    $region17: #{dec_ae_forward.1} parent=1 // pred_fallthru
      _
    // Predicated region
    $region18: #{dec_ae_forward.1} parent=1 // pred_check
      _
    $region19: #{dec_ae_forward.1} parent=1 // pred_check_branch
      %59 = sbr.rel (0) target = $region21
    $region20: #{dec_ae_forward.1} parent=1 // pred_region
      %s61 = ssub.s32 1024, 1024
      %62 = vsyncadd [#allocation10], %s61
      %s63 = sshll.u32 [#allocation9], 4
      %s64 = int_to_ptr.vmem [resolvable:$true] %s63
      %69 = dma.hbm_to_vmem [thread:$0]  %s4, 1024, %s64, [#allocation10], 64, 64, 4
    $region21: #{dec_ae_forward.1} parent=1 // pred_fallthru
      _
    // Predicated region
    $region22: #{dec_ae_forward.1} parent=1 // pred_check
      _
    $region23: #{dec_ae_forward.1} parent=1 // pred_check_branch
      %71 = sbr.rel (0) target = $region25
    $region24: #{dec_ae_forward.1} parent=1 // pred_region
      _
    $region25: #{dec_ae_forward.1} parent=1 // pred_fallthru
      _
    // Predicated region
    $region26: #{dec_ae_forward.1} parent=1 // pred_check
      _
    $region27: #{dec_ae_forward.1} parent=1 // pred_check_branch
      %73 = sbr.rel (0) target = $region29
    $region28: #{dec_ae_forward.1} parent=1 // pred_region
      _
    $region29: #{dec_ae_forward.1} parent=1 // pred_fallthru
      _
    // Predicated region
    $region30: #{dec_ae_forward.1} parent=1 // pred_check
      _
    $region31: #{dec_ae_forward.1} parent=1 // pred_check_branch
      %75 = sbr.rel (0) target = $region33
    $region32: #{dec_ae_forward.1} parent=1 // pred_region
      _
    $region33: #{dec_ae_forward.1} parent=1 // pred_fallthru
      _
    // Predicated region
    $region34: #{dec_ae_forward.1} parent=1 // pred_check
      _
    $region35: #{dec_ae_forward.1} parent=1 // pred_check_branch
      %77 = sbr.rel (0) target = $region37
    $region36: #{dec_ae_forward.1} parent=1 // pred_region
      _
    $region37: #{dec_ae_forward.1} parent=1 // pred_fallthru
      _
    // Predicated region
    $region38: #{dec_ae_forward.1} parent=1 // pred_check
      _
    $region39: #{dec_ae_forward.1} parent=1 // pred_check_branch
      %79 = sbr.rel (0) target = $region41
    $region40: #{dec_ae_forward.1} parent=1 // pred_region
      %80 = dma.done [#allocation4], 1024
    $region41: #{dec_ae_forward.1} parent=1 // pred_fallthru
      _
    // Predicated region
    $region42: #{dec_ae_forward.1} parent=1 // pred_check
      _
    $region43: #{dec_ae_forward.1} parent=1 // pred_check_branch
      %82 = sbr.rel (0) target = $region45
    $region44: #{dec_ae_forward.1} parent=1 // pred_region
      %83 = dma.done [#allocation7], 1024
    $region45: #{dec_ae_forward.1} parent=1 // pred_fallthru
      _
    // Predicated region
    $region46: #{dec_ae_forward.1} parent=1 // pred_check
      _
    $region47: #{dec_ae_forward.1} parent=1 // pred_check_branch
      %85 = sbr.rel (0) target = $region49
    $region48: #{dec_ae_forward.1} parent=1 // pred_region
      %86 = dma.done [#allocation7], 1024
    $region49: #{dec_ae_forward.1} parent=1 // pred_fallthru
      _
    // Predicated region
    $region50: #{dec_ae_forward.1} parent=1 // pred_check
      _
    $region51: #{dec_ae_forward.1} parent=1 // pred_check_branch
      %88 = sbr.rel (0) target = $region53
    $region52: #{dec_ae_forward.1} parent=1 // pred_region
      %89 = dma.done [#allocation10], 1024
    $region53: #{dec_ae_forward.1} parent=1 // pred_fallthru
      _
    %v91 = vld [vmem:[#allocation3] sm:$0xf]
    %v92 = vld [vmem:[#allocation3 + $0x4] sm:$0xf]
    %v93 = vld [vmem:[#allocation3 + $0x8] sm:$0xf]
    %v94 = vld [vmem:[#allocation3 + $0xc] sm:$0xf]
    %v95 = vld [vmem:[#allocation3 + $0x10] sm:$0xf]
    %v96 = vld [vmem:[#allocation3 + $0x14] sm:$0xf]
    %v97 = vld [vmem:[#allocation3 + $0x18] sm:$0xf]
    %v98 = vld [vmem:[#allocation3 + $0x1c] sm:$0xf]
    %v99 = vld [vmem:[#allocation3 + $0x20] sm:$0xf]
    %v100 = vld [vmem:[#allocation3 + $0x24] sm:$0xf]
    %v101 = vld [vmem:[#allocation3 + $0x28] sm:$0xf]
    %v102 = vld [vmem:[#allocation3 + $0x2c] sm:$0xf]
    %v103 = vld [vmem:[#allocation3 + $0x30] sm:$0xf]
    %v104 = vld [vmem:[#allocation3 + $0x34] sm:$0xf]
    %v105 = vld [vmem:[#allocation3 + $0x38] sm:$0xf]
    %v106 = vld [vmem:[#allocation3 + $0x3c] sm:$0xf]
    %v107 = vld [vmem:[#allocation6] sm:$0xf]
    %v108 = vld [vmem:[#allocation6 + $0x4] sm:$0xf]
    %v109 = vld [vmem:[#allocation6 + $0x8] sm:$0xf]
    %v110 = vld [vmem:[#allocation6 + $0xc] sm:$0xf]
    %v111 = vld [vmem:[#allocation6 + $0x10] sm:$0xf]
    %v112 = vld [vmem:[#allocation6 + $0x14] sm:$0xf]
    %v113 = vld [vmem:[#allocation6 + $0x18] sm:$0xf]
    %v114 = vld [vmem:[#allocation6 + $0x1c] sm:$0xf]
    %v115 = vld [vmem:[#allocation6 + $0x20] sm:$0xf]
    %v116 = vld [vmem:[#allocation6 + $0x24] sm:$0xf]
    %v117 = vld [vmem:[#allocation6 + $0x28] sm:$0xf]
    %v118 = vld [vmem:[#allocation6 + $0x2c] sm:$0xf]
    %v119 = vld [vmem:[#allocation6 + $0x30] sm:$0xf]
    %v120 = vld [vmem:[#allocation6 + $0x34] sm:$0xf]
    %v121 = vld [vmem:[#allocation6 + $0x38] sm:$0xf]
    %v122 = vld [vmem:[#allocation6 + $0x3c] sm:$0xf]
    %v123 = vld [vmem:[#allocation8] sm:$0xf]
    %v124 = vld [vmem:[#allocation8 + $0x4] sm:$0xf]
    %v125 = vld [vmem:[#allocation8 + $0x8] sm:$0xf]
    %v126 = vld [vmem:[#allocation8 + $0xc] sm:$0xf]
    %v127 = vld [vmem:[#allocation8 + $0x10] sm:$0xf]
    %v128 = vld [vmem:[#allocation8 + $0x14] sm:$0xf]
    %v129 = vld [vmem:[#allocation8 + $0x18] sm:$0xf]
    %v130 = vld [vmem:[#allocation8 + $0x1c] sm:$0xf]
    %v131 = vld [vmem:[#allocation8 + $0x20] sm:$0xf]
    %v132 = vld [vmem:[#allocation8 + $0x24] sm:$0xf]
    %v133 = vld [vmem:[#allocation8 + $0x28] sm:$0xf]
    %v134 = vld [vmem:[#allocation8 + $0x2c] sm:$0xf]
    %v135 = vld [vmem:[#allocation8 + $0x30] sm:$0xf]
    %v136 = vld [vmem:[#allocation8 + $0x34] sm:$0xf]
    %v137 = vld [vmem:[#allocation8 + $0x38] sm:$0xf]
    %v138 = vld [vmem:[#allocation8 + $0x3c] sm:$0xf]
    %v139 = vld [vmem:[#allocation9] sm:$0xf]
    %v140 = vld [vmem:[#allocation9 + $0x4] sm:$0xf]
    %v141 = vld [vmem:[#allocation9 + $0x8] sm:$0xf]
    %v142 = vld [vmem:[#allocation9 + $0xc] sm:$0xf]
    %v143 = vld [vmem:[#allocation9 + $0x10] sm:$0xf]
    %v144 = vld [vmem:[#allocation9 + $0x14] sm:$0xf]
    %v145 = vld [vmem:[#allocation9 + $0x18] sm:$0xf]
    %v146 = vld [vmem:[#allocation9 + $0x1c] sm:$0xf]
    %v147 = vld [vmem:[#allocation9 + $0x20] sm:$0xf]
    %v148 = vld [vmem:[#allocation9 + $0x24] sm:$0xf]
    %v149 = vld [vmem:[#allocation9 + $0x28] sm:$0xf]
    %v150 = vld [vmem:[#allocation9 + $0x2c] sm:$0xf]
    %v151 = vld [vmem:[#allocation9 + $0x30] sm:$0xf]
    %v152 = vld [vmem:[#allocation9 + $0x34] sm:$0xf]
    %v153 = vld [vmem:[#allocation9 + $0x38] sm:$0xf]
    %v154 = vld [vmem:[#allocation9 + $0x3c] sm:$0xf]
    %v155 = vld [vmem:[%s5] sm:$0x1]
    %v156 = vld [vmem:[%s6] sm:$0x1]
    %v157 = vld [vmem:[%s7] sm:$0x1]
    %v158 = vld [vmem:[%s8] sm:$0x1]
    %v159 = vld [vmem:[%s0] sm:$0xf]
    %v161 = vlaneseq
    %v162 = vshrl.u32 %v161, 7
    %v163 = vsub.s32 0, %v162
    %v164 = vrot.slane %v155, %v163
    %v182 = vunpack.c.l.b16 %v91
    %v183 = vunpack.c.l.b16 %v92
    %v184 = vunpack.c.l.b16 %v93
    %v185 = vunpack.c.l.b16 %v94
    %v186 = vunpack.c.l.b16 %v95
    %v187 = vunpack.c.l.b16 %v96
    %v188 = vunpack.c.l.b16 %v97
    %v189 = vunpack.c.l.b16 %v98
    %v190 = vunpack.c.l.b16 %v99
    %v191 = vunpack.c.l.b16 %v100
    %v192 = vunpack.c.l.b16 %v101
    %v193 = vunpack.c.l.b16 %v102
    %v194 = vunpack.c.l.b16 %v103
    %v195 = vunpack.c.l.b16 %v104
    %v196 = vunpack.c.l.b16 %v105
    %v197 = vunpack.c.l.b16 %v106
    %v198 = vpack.c.b16 %v183, %v182
    %v199 = vpack.c.b16 %v185, %v184
    %v200 = vpack.c.b16 %v187, %v186
    %v201 = vpack.c.b16 %v189, %v188
    %v202 = vpack.c.b16 %v191, %v190
    %v203 = vpack.c.b16 %v193, %v192
    %v204 = vpack.c.b16 %v195, %v194
    %v205 = vpack.c.b16 %v197, %v196
    %214 = vmatprep.subr.bf16.mxu0 0
    %215 = vmatpush1.bf16.msra.mxu0 %v205
    %216 = vmatprep.subr.bf16.mxu0 0
    %217 = vmatpush1.bf16.msra.mxu0 %v204
    %218 = vmatprep.subr.bf16.mxu0 0
    %219 = vmatpush1.bf16.msra.mxu0 %v203
    %220 = vmatprep.subr.bf16.mxu0 0
    %221 = vmatpush1.bf16.msra.mxu0 %v202
    %222 = vmatprep.subr.bf16.mxu0 0
    %223 = vmatpush1.bf16.msra.mxu0 %v201
    %224 = vmatprep.subr.bf16.mxu0 0
    %225 = vmatpush1.bf16.msra.mxu0 %v200
    %226 = vmatprep.subr.bf16.mxu0 0
    %227 = vmatpush1.bf16.msra.mxu0 %v199
    %228 = vmatprep.subr.bf16.mxu0 0
    %229 = vmatpush1.bf16.msra.mxu0 %v198
    %230 = vmatprep.subr.bf16.mxu0 0
    %231 = vmatpush2.bf16.msra.mxu0 0
    %232 = vmatprep.subr.bf16.mxu0 0
    %233 = vmatpush2.bf16.msra.mxu0 0
    %234 = vmatprep.subr.bf16.mxu0 0
    %235 = vmatpush2.bf16.msra.mxu0 0
    %236 = vmatprep.subr.bf16.mxu0 0
    %237 = vmatpush2.bf16.msra.mxu0 0
    %238 = vmatprep.subr.bf16.mxu0 0
    %239 = vmatpush2.bf16.msra.mxu0 0
    %240 = vmatprep.subr.bf16.mxu0 0
    %241 = vmatpush2.bf16.msra.mxu0 0
    %242 = vmatprep.subr.bf16.mxu0 0
    %243 = vmatpush2.bf16.msra.mxu0 0
    %244 = vmatprep.subr.bf16.mxu0 0
    %245 = vmatpush2.bf16.msra.mxu0 0
    %246 = vmatprep.mubr.bf16.mxu0 0
    %247 = vmatmul.mubr.bf16.gmra.mxu0 %v159
    %v248 = vpop.f32.mrf.mxu0
    %v249 = vadd.f32 %v164, %v248
    %v250 = vpop.f32.mrf.mxu0
    %v251 = vpop.f32.mrf.mxu0
    %v252 = vpop.f32.mrf.mxu0
    %253 = vdwg.mxu0
    %v254 = vmax.f32 %v249, 0.0
    %v255 = vpack.c.bf16 %v254, %v254
    %256 = vst [vmem:[#allocation2] sm:$0xf] %v255
    %v257 = vld [vmem:[#allocation2] sm:$0xf]
    %v259 = vlaneseq
    %v260 = vshrl.u32 %v259, 7
    %v261 = vsub.s32 0, %v260
    %v262 = vrot.slane %v156, %v261
    %v280 = vunpack.c.l.b16 %v123
    %v281 = vunpack.c.l.b16 %v124
    %v282 = vunpack.c.l.b16 %v125
    %v283 = vunpack.c.l.b16 %v126
    %v284 = vunpack.c.l.b16 %v127
    %v285 = vunpack.c.l.b16 %v128
    %v286 = vunpack.c.l.b16 %v129
    %v287 = vunpack.c.l.b16 %v130
    %v288 = vunpack.c.l.b16 %v131
    %v289 = vunpack.c.l.b16 %v132
    %v290 = vunpack.c.l.b16 %v133
    %v291 = vunpack.c.l.b16 %v134
    %v292 = vunpack.c.l.b16 %v135
    %v293 = vunpack.c.l.b16 %v136
    %v294 = vunpack.c.l.b16 %v137
    %v295 = vunpack.c.l.b16 %v138
    %v296 = vpack.c.b16 %v281, %v280
    %v297 = vpack.c.b16 %v283, %v282
    %v298 = vpack.c.b16 %v285, %v284
    %v299 = vpack.c.b16 %v287, %v286
    %v300 = vpack.c.b16 %v289, %v288
    %v301 = vpack.c.b16 %v291, %v290
    %v302 = vpack.c.b16 %v293, %v292
    %v303 = vpack.c.b16 %v295, %v294
    %312 = vmatprep.subr.bf16.mxu0 0
    %313 = vmatpush1.bf16.msra.mxu0 %v303
    %314 = vmatprep.subr.bf16.mxu0 0
    %315 = vmatpush1.bf16.msra.mxu0 %v302
    %316 = vmatprep.subr.bf16.mxu0 0
    %317 = vmatpush1.bf16.msra.mxu0 %v301
    %318 = vmatprep.subr.bf16.mxu0 0
    %319 = vmatpush1.bf16.msra.mxu0 %v300
    %320 = vmatprep.subr.bf16.mxu0 0
    %321 = vmatpush1.bf16.msra.mxu0 %v299
    %322 = vmatprep.subr.bf16.mxu0 0
    %323 = vmatpush1.bf16.msra.mxu0 %v298
    %324 = vmatprep.subr.bf16.mxu0 0
    %325 = vmatpush1.bf16.msra.mxu0 %v297
    %326 = vmatprep.subr.bf16.mxu0 0
    %327 = vmatpush1.bf16.msra.mxu0 %v296
    %328 = vmatprep.subr.bf16.mxu0 0
    %329 = vmatpush2.bf16.msra.mxu0 0
    %330 = vmatprep.subr.bf16.mxu0 0
    %331 = vmatpush2.bf16.msra.mxu0 0
    %332 = vmatprep.subr.bf16.mxu0 0
    %333 = vmatpush2.bf16.msra.mxu0 0
    %334 = vmatprep.subr.bf16.mxu0 0
    %335 = vmatpush2.bf16.msra.mxu0 0
    %336 = vmatprep.subr.bf16.mxu0 0
    %337 = vmatpush2.bf16.msra.mxu0 0
    %338 = vmatprep.subr.bf16.mxu0 0
    %339 = vmatpush2.bf16.msra.mxu0 0
    %340 = vmatprep.subr.bf16.mxu0 0
    %341 = vmatpush2.bf16.msra.mxu0 0
    %342 = vmatprep.subr.bf16.mxu0 0
    %343 = vmatpush2.bf16.msra.mxu0 0
    %344 = vmatprep.mubr.bf16.mxu0 0
    %345 = vmatmul.mubr.bf16.gmra.mxu0 %v257
    %v346 = vpop.f32.mrf.mxu0
    %v347 = vadd.f32 %v262, %v346
    %v348 = vpop.f32.mrf.mxu0
    %v349 = vpop.f32.mrf.mxu0
    %v350 = vpop.f32.mrf.mxu0
    %351 = vdwg.mxu0
    %v352 = vmax.f32 %v347, 0.0
    %353 = vst [vmem:[#allocation11] sm:$0xff] %v352
    %v354 = vpack.c.bf16 %v352, %v352
    %v356 = vlaneseq
    %v357 = vshrl.u32 %v356, 7
    %v358 = vsub.s32 0, %v357
    %v359 = vrot.slane %v158, %v358
    %v377 = vunpack.c.l.b16 %v139
    %v378 = vunpack.c.l.b16 %v140
    %v379 = vunpack.c.l.b16 %v141
    %v380 = vunpack.c.l.b16 %v142
    %v381 = vunpack.c.l.b16 %v143
    %v382 = vunpack.c.l.b16 %v144
    %v383 = vunpack.c.l.b16 %v145
    %v384 = vunpack.c.l.b16 %v146
    %v385 = vunpack.c.l.b16 %v147
    %v386 = vunpack.c.l.b16 %v148
    %v387 = vunpack.c.l.b16 %v149
    %v388 = vunpack.c.l.b16 %v150
    %v389 = vunpack.c.l.b16 %v151
    %v390 = vunpack.c.l.b16 %v152
    %v391 = vunpack.c.l.b16 %v153
    %v392 = vunpack.c.l.b16 %v154
    %v393 = vpack.c.b16 %v378, %v377
    %v394 = vpack.c.b16 %v380, %v379
    %v395 = vpack.c.b16 %v382, %v381
    %v396 = vpack.c.b16 %v384, %v383
    %v397 = vpack.c.b16 %v386, %v385
    %v398 = vpack.c.b16 %v388, %v387
    %v399 = vpack.c.b16 %v390, %v389
    %v400 = vpack.c.b16 %v392, %v391
    %409 = vmatprep.subr.bf16.mxu0 0
    %410 = vmatpush1.bf16.msra.mxu0 %v400
    %411 = vmatprep.subr.bf16.mxu0 0
    %412 = vmatpush1.bf16.msra.mxu0 %v399
    %413 = vmatprep.subr.bf16.mxu0 0
    %414 = vmatpush1.bf16.msra.mxu0 %v398
    %415 = vmatprep.subr.bf16.mxu0 0
    %416 = vmatpush1.bf16.msra.mxu0 %v397
    %417 = vmatprep.subr.bf16.mxu0 0
    %418 = vmatpush1.bf16.msra.mxu0 %v396
    %419 = vmatprep.subr.bf16.mxu0 0
    %420 = vmatpush1.bf16.msra.mxu0 %v395
    %421 = vmatprep.subr.bf16.mxu0 0
    %422 = vmatpush1.bf16.msra.mxu0 %v394
    %423 = vmatprep.subr.bf16.mxu0 0
    %424 = vmatpush1.bf16.msra.mxu0 %v393
    %425 = vmatprep.subr.bf16.mxu0 0
    %426 = vmatpush2.bf16.msra.mxu0 0
    %427 = vmatprep.subr.bf16.mxu0 0
    %428 = vmatpush2.bf16.msra.mxu0 0
    %429 = vmatprep.subr.bf16.mxu0 0
    %430 = vmatpush2.bf16.msra.mxu0 0
    %431 = vmatprep.subr.bf16.mxu0 0
    %432 = vmatpush2.bf16.msra.mxu0 0
    %433 = vmatprep.subr.bf16.mxu0 0
    %434 = vmatpush2.bf16.msra.mxu0 0
    %435 = vmatprep.subr.bf16.mxu0 0
    %436 = vmatpush2.bf16.msra.mxu0 0
    %437 = vmatprep.subr.bf16.mxu0 0
    %438 = vmatpush2.bf16.msra.mxu0 0
    %439 = vmatprep.subr.bf16.mxu0 0
    %440 = vmatpush2.bf16.msra.mxu0 0
    %441 = vmatprep.mubr.bf16.mxu0 0
    %442 = vmatmul.mubr.bf16.gmra.mxu0 %v354
    %v443 = vpop.f32.mrf.mxu0
    %v444 = vadd.f32 %v359, %v443
    %v445 = vpop.f32.mrf.mxu0
    %v446 = vpop.f32.mrf.mxu0
    %v447 = vpop.f32.mrf.mxu0
    %448 = vdwg.mxu0
    %v449 = vmax.f32 %v444, 0.0
    %v450 = vpack.c.bf16 %v449, %v449
    %451 = vst [vmem:[#allocation2] sm:$0xf] %v450
    %v452 = vld [vmem:[#allocation2] sm:$0xf]
    %v454 = vlaneseq
    %v455 = vshrl.u32 %v454, 7
    %v456 = vsub.s32 0, %v455
    %v457 = vrot.slane %v157, %v456
    %v475 = vunpack.c.l.b16 %v107
    %v476 = vunpack.c.l.b16 %v108
    %v477 = vunpack.c.l.b16 %v109
    %v478 = vunpack.c.l.b16 %v110
    %v479 = vunpack.c.l.b16 %v111
    %v480 = vunpack.c.l.b16 %v112
    %v481 = vunpack.c.l.b16 %v113
    %v482 = vunpack.c.l.b16 %v114
    %v483 = vunpack.c.l.b16 %v115
    %v484 = vunpack.c.l.b16 %v116
    %v485 = vunpack.c.l.b16 %v117
    %v486 = vunpack.c.l.b16 %v118
    %v487 = vunpack.c.l.b16 %v119
    %v488 = vunpack.c.l.b16 %v120
    %v489 = vunpack.c.l.b16 %v121
    %v490 = vunpack.c.l.b16 %v122
    %v491 = vpack.c.b16 %v476, %v475
    %v492 = vpack.c.b16 %v478, %v477
    %v493 = vpack.c.b16 %v480, %v479
    %v494 = vpack.c.b16 %v482, %v481
    %v495 = vpack.c.b16 %v484, %v483
    %v496 = vpack.c.b16 %v486, %v485
    %v497 = vpack.c.b16 %v488, %v487
    %v498 = vpack.c.b16 %v490, %v489
    %507 = vmatprep.subr.bf16.mxu0 0
    %508 = vmatpush1.bf16.msra.mxu0 %v498
    %509 = vmatprep.subr.bf16.mxu0 0
    %510 = vmatpush1.bf16.msra.mxu0 %v497
    %511 = vmatprep.subr.bf16.mxu0 0
    %512 = vmatpush1.bf16.msra.mxu0 %v496
    %513 = vmatprep.subr.bf16.mxu0 0
    %514 = vmatpush1.bf16.msra.mxu0 %v495
    %515 = vmatprep.subr.bf16.mxu0 0
    %516 = vmatpush1.bf16.msra.mxu0 %v494
    %517 = vmatprep.subr.bf16.mxu0 0
    %518 = vmatpush1.bf16.msra.mxu0 %v493
    %519 = vmatprep.subr.bf16.mxu0 0
    %520 = vmatpush1.bf16.msra.mxu0 %v492
    %521 = vmatprep.subr.bf16.mxu0 0
    %522 = vmatpush1.bf16.msra.mxu0 %v491
    %523 = vmatprep.subr.bf16.mxu0 0
    %524 = vmatpush2.bf16.msra.mxu0 0
    %525 = vmatprep.subr.bf16.mxu0 0
    %526 = vmatpush2.bf16.msra.mxu0 0
    %527 = vmatprep.subr.bf16.mxu0 0
    %528 = vmatpush2.bf16.msra.mxu0 0
    %529 = vmatprep.subr.bf16.mxu0 0
    %530 = vmatpush2.bf16.msra.mxu0 0
    %531 = vmatprep.subr.bf16.mxu0 0
    %532 = vmatpush2.bf16.msra.mxu0 0
    %533 = vmatprep.subr.bf16.mxu0 0
    %534 = vmatpush2.bf16.msra.mxu0 0
    %535 = vmatprep.subr.bf16.mxu0 0
    %536 = vmatpush2.bf16.msra.mxu0 0
    %537 = vmatprep.subr.bf16.mxu0 0
    %538 = vmatpush2.bf16.msra.mxu0 0
    %539 = vmatprep.mubr.bf16.mxu0 0
    %540 = vmatmul.mubr.bf16.gmra.mxu0 %v452
    %v541 = vpop.f32.mrf.mxu0
    %v542 = vadd.f32 %v457, %v541
    %v543 = vpop.f32.mrf.mxu0
    %v544 = vpop.f32.mrf.mxu0
    %v545 = vpop.f32.mrf.mxu0
    %546 = vdwg.mxu0
    %v547 = vmul.f32 %v542, 0.5
    %v548 = vtanh.pop %v547
    %v549 = vmul.f32 %v548, 0.5
    %v550 = vadd.f32 %v549, 0.5
    %v551 = vpack.c.bf16 %v550, %v550
    %552 = vst [vmem:[%s10] sm:$0xf] %v551
    // Predicated region
    $region54: #{dec_ae_forward.1} parent=1 // pred_check
      _
    $region55: #{dec_ae_forward.1} parent=1 // pred_check_branch
      %554 = sbr.rel (0) target = $region57
    $region56: #{dec_ae_forward.1} parent=1 // pred_region
      %s556 = ssub.s32 128, 128
      %557 = vsyncadd [#allocation5], %s556
      %s559 = sshll.u32 [#allocation11], 4
      %s560 = int_to_ptr.vmem [resolvable:$true] %s559
      %562 = dma.vmem_to_hbm [thread:$0]  %s560, 128, %s9, [#allocation5]
    $region57: #{dec_ae_forward.1} parent=1 // pred_fallthru
      _
    // Predicated region
    $region58: #{dec_ae_forward.1} parent=1 // pred_check
      _
    $region59: #{dec_ae_forward.1} parent=1 // pred_check_branch
      %564 = sbr.rel (0) target = $region61
    $region60: #{dec_ae_forward.1} parent=1 // pred_region
      _
    $region61: #{dec_ae_forward.1} parent=1 // pred_fallthru
      _
    // Predicated region
    $region62: #{dec_ae_forward.1} parent=1 // pred_check
      _
    $region63: #{dec_ae_forward.1} parent=1 // pred_check_branch
      %566 = sbr.rel (0) target = $region65
    $region64: #{dec_ae_forward.1} parent=1 // pred_region
      %567 = dma.done [#allocation5], 128
    $region65: #{dec_ae_forward.1} parent=1 // pred_fallthru
      _
    // Predicated region
    $region66: #{dec_ae_forward.1} parent=1 // pred_check
      _
    $region67: #{dec_ae_forward.1} parent=1 // pred_check_branch
      %569 = sbr.rel (0) target = $region69
    $region68: #{dec_ae_forward.1} parent=1 // pred_region
      _
    $region69: #{dec_ae_forward.1} parent=1 // pred_fallthru
      _
    %570 = vsyncpa [#allocation4], 1
    %571 = vsyncpa [#allocation7], 1
    %572 = vsyncpa [#allocation10], 1
    %573 = vsyncpa [#allocation5], 1

// kernel: dec_ae_forward.1
$region0: #{dec_ae_forward.1}
  #allocation0 [shape = 'u32[]', space=smem, size = 0x4, offset = 0x4, fixed_abs, tag = 'smem constant byte address 0x4 - core index']
  #allocation1 [shape = 'u32[144,128]{1,0:T(1,128)}', space=vmem, size = 0x12000, scoped, tag = 'internal scratch']
  #allocation2 [shape = 'bf16[1,8,128]{2,1,0:T(8,128)(2,1)}', space=vmem, size = 0x800, scoped, tag = 'scratch operand']
  %s0 = inlined_call_operand.vmem [shape: bf16[8,128], index: 0, kind: input, shape index: {}]
  %s1 = inlined_call_operand.hbm [shape: bf16[128,128], index: 1, kind: input, shape index: {}]
  %s2 = inlined_call_operand.hbm [shape: bf16[128,128], index: 2, kind: input, shape index: {}]
  %s3 = inlined_call_operand.hbm [shape: bf16[128,128], index: 3, kind: input, shape index: {}]
  %s4 = inlined_call_operand.hbm [shape: bf16[128,128], index: 4, kind: input, shape index: {}]
  %s5 = inlined_call_operand.vmem [shape: f32[1,128], index: 5, kind: input, shape index: {}]
  %s6 = inlined_call_operand.vmem [shape: f32[1,128], index: 6, kind: input, shape index: {}]
  %s7 = inlined_call_operand.vmem [shape: f32[1,128], index: 7, kind: input, shape index: {}]
  %s8 = inlined_call_operand.vmem [shape: f32[1,128], index: 8, kind: input, shape index: {}]
  %s9 = inlined_call_operand.hbm [shape: f32[8,128], index: 9, kind: output, shape index: {0}]
  %s10 = inlined_call_operand.vmem [shape: bf16[8,128], index: 10, kind: output, shape index: {1}]
  %11 = xla_tuple %s9, %s10
  %s12 = sld [smem:[#allocation0]]
  $region70: #{dec_ae_forward.1} parent=0
    _
  %s14 = ssub.s32 1, %s12
  %s15 = scalar_select 0, %s14, %s12
  $region1: #{dec_ae_forward.1} parent=0
    #allocation3 [shape = 'u8[32768]{0}', space=vmem, size = 0x8000, scoped, tag = 'input window, operand 1, single buffered']
    #allocation4 [shape = 's32[1]{0}', space=sflag, size = 0x4, scoped, tag = 'scoped memory for dec_ae_forward.1']
    #allocation5 [shape = 's32[1]{0}', space=sflag, size = 0x4, scoped, tag = 'scoped memory for dec_ae_forward.1']
    #allocation6 [shape = 'u8[32768]{0}', space=vmem, size = 0x8000, scoped, tag = 'input window, operand 2, single buffered']
    #allocation7 [shape = 's32[1]{0}', space=sflag, size = 0x4, scoped, tag = 'scoped memory for dec_ae_forward.1']
    #allocation8 [shape = 'u8[32768]{0}', space=vmem, size = 0x8000, scoped, tag = 'input window, operand 3, single buffered']
    #allocation9 [shape = 'u8[32768]{0}', space=vmem, size = 0x8000, scoped, tag = 'input window, operand 4, single buffered']
    #allocation10 [shape = 's32[1]{0}', space=sflag, size = 0x4, scoped, tag = 'scoped memory for dec_ae_forward.1']
    #allocation11 [shape = 'u8[4096]{0}', space=vmem, size = 0x1000, scoped, tag = 'output window, operand 0, single buffered']
    %16 = vsyncpa [#allocation4], 0
    %17 = vsyncpa [#allocation7], 0
    %18 = vsyncpa [#allocation10], 0
    %19 = vsyncpa [#allocation5], 0
    // Predicated region
    $region2: #{dec_ae_forward.1} parent=1 // pred_check
      _
    $region3: #{dec_ae_forward.1} parent=1 // pred_check_branch
      %21 = sbr.rel (0) target = $region5
    $region4: #{dec_ae_forward.1} parent=1 // pred_region
      _
    $region5: #{dec_ae_forward.1} parent=1 // pred_fallthru
      _
    // Predicated region
    $region6: #{dec_ae_forward.1} parent=1 // pred_check
      _
    $region7: #{dec_ae_forward.1} parent=1 // pred_check_branch
      %23 = sbr.rel (0) target = $region9
    $region8: #{dec_ae_forward.1} parent=1 // pred_region
      %s25 = ssub.s32 1024, 1024
      %26 = vsyncadd [#allocation4], %s25
      %s27 = sshll.u32 [#allocation3], 4
      %s28 = int_to_ptr.vmem [resolvable:$true] %s27
      %33 = dma.hbm_to_vmem [thread:$0]  %s1, 1024, %s28, [#allocation4], 64, 64, 4
    $region9: #{dec_ae_forward.1} parent=1 // pred_fallthru
      _
    // Predicated region
    $region10: #{dec_ae_forward.1} parent=1 // pred_check
      _
    $region11: #{dec_ae_forward.1} parent=1 // pred_check_branch
      %35 = sbr.rel (0) target = $region13
    $region12: #{dec_ae_forward.1} parent=1 // pred_region
      %s37 = ssub.s32 1024, 1024
      %38 = vsyncadd [#allocation7], %s37
      %s39 = sshll.u32 [#allocation6], 4
      %s40 = int_to_ptr.vmem [resolvable:$true] %s39
      %45 = dma.hbm_to_vmem [thread:$0]  %s2, 1024, %s40, [#allocation7], 64, 64, 4
    $region13: #{dec_ae_forward.1} parent=1 // pred_fallthru
      _
    // Predicated region
    $region14: #{dec_ae_forward.1} parent=1 // pred_check
      _
    $region15: #{dec_ae_forward.1} parent=1 // pred_check_branch
      %47 = sbr.rel (0) target = $region17
    $region16: #{dec_ae_forward.1} parent=1 // pred_region
      %s49 = ssub.s32 1024, 1024
      %50 = vsyncadd [#allocation7], %s49
      %s51 = sshll.u32 [#allocation8], 4
      %s52 = int_to_ptr.vmem [resolvable:$true] %s51
      %57 = dma.hbm_to_vmem [thread:$0]  %s3, 1024, %s52, [#allocation7], 64, 64, 4
    $region17: #{dec_ae_forward.1} parent=1 // pred_fallthru
      _
    // Predicated region
    $region18: #{dec_ae_forward.1} parent=1 // pred_check
      _
    $region19: #{dec_ae_forward.1} parent=1 // pred_check_branch
      %59 = sbr.rel (0) target = $region21
    $region20: #{dec_ae_forward.1} parent=1 // pred_region
      %s61 = ssub.s32 1024, 1024
      %62 = vsyncadd [#allocation10], %s61
      %s63 = sshll.u32 [#allocation9], 4
      %s64 = int_to_ptr.vmem [resolvable:$true] %s63
      %69 = dma.hbm_to_vmem [thread:$0]  %s4, 1024, %s64, [#allocation10], 64, 64, 4
    $region21: #{dec_ae_forward.1} parent=1 // pred_fallthru
      _
    // Predicated region
    $region22: #{dec_ae_forward.1} parent=1 // pred_check
      _
    $region23: #{dec_ae_forward.1} parent=1 // pred_check_branch
      %71 = sbr.rel (0) target = $region25
    $region24: #{dec_ae_forward.1} parent=1 // pred_region
      _
    $region25: #{dec_ae_forward.1} parent=1 // pred_fallthru
      _
    // Predicated region
    $region26: #{dec_ae_forward.1} parent=1 // pred_check
      _
    $region27: #{dec_ae_forward.1} parent=1 // pred_check_branch
      %73 = sbr.rel (0) target = $region29
    $region28: #{dec_ae_forward.1} parent=1 // pred_region
      _
    $region29: #{dec_ae_forward.1} parent=1 // pred_fallthru
      _
    // Predicated region
    $region30: #{dec_ae_forward.1} parent=1 // pred_check
      _
    $region31: #{dec_ae_forward.1} parent=1 // pred_check_branch
      %75 = sbr.rel (0) target = $region33
    $region32: #{dec_ae_forward.1} parent=1 // pred_region
      _
    $region33: #{dec_ae_forward.1} parent=1 // pred_fallthru
      _
    // Predicated region
    $region34: #{dec_ae_forward.1} parent=1 // pred_check
      _
    $region35: #{dec_ae_forward.1} parent=1 // pred_check_branch
      %77 = sbr.rel (0) target = $region37
    $region36: #{dec_ae_forward.1} parent=1 // pred_region
      _
    $region37: #{dec_ae_forward.1} parent=1 // pred_fallthru
      _
    // Predicated region
    $region38: #{dec_ae_forward.1} parent=1 // pred_check
      _
    $region39: #{dec_ae_forward.1} parent=1 // pred_check_branch
      %79 = sbr.rel (0) target = $region41
    $region40: #{dec_ae_forward.1} parent=1 // pred_region
      %80 = dma.done [#allocation4], 1024
    $region41: #{dec_ae_forward.1} parent=1 // pred_fallthru
      _
    // Predicated region
    $region42: #{dec_ae_forward.1} parent=1 // pred_check
      _
    $region43: #{dec_ae_forward.1} parent=1 // pred_check_branch
      %82 = sbr.rel (0) target = $region45
    $region44: #{dec_ae_forward.1} parent=1 // pred_region
      %83 = dma.done [#allocation7], 1024
    $region45: #{dec_ae_forward.1} parent=1 // pred_fallthru
      _
    // Predicated region
    $region46: #{dec_ae_forward.1} parent=1 // pred_check
      _
    $region47: #{dec_ae_forward.1} parent=1 // pred_check_branch
      %85 = sbr.rel (0) target = $region49
    $region48: #{dec_ae_forward.1} parent=1 // pred_region
      %86 = dma.done [#allocation7], 1024
    $region49: #{dec_ae_forward.1} parent=1 // pred_fallthru
      _
    // Predicated region
    $region50: #{dec_ae_forward.1} parent=1 // pred_check
      _
    $region51: #{dec_ae_forward.1} parent=1 // pred_check_branch
      %88 = sbr.rel (0) target = $region53
    $region52: #{dec_ae_forward.1} parent=1 // pred_region
      %89 = dma.done [#allocation10], 1024
    $region53: #{dec_ae_forward.1} parent=1 // pred_fallthru
      _
    %v91 = vld [vmem:[#allocation3] sm:$0xf]
    %v92 = vld [vmem:[#allocation3 + $0x4] sm:$0xf]
    %v93 = vld [vmem:[#allocation3 + $0x8] sm:$0xf]
    %v94 = vld [vmem:[#allocation3 + $0xc] sm:$0xf]
    %v95 = vld [vmem:[#allocation3 + $0x10] sm:$0xf]
    %v96 = vld [vmem:[#allocation3 + $0x14] sm:$0xf]
    %v97 = vld [vmem:[#allocation3 + $0x18] sm:$0xf]
    %v98 = vld [vmem:[#allocation3 + $0x1c] sm:$0xf]
    %v99 = vld [vmem:[#allocation3 + $0x20] sm:$0xf]
    %v100 = vld [vmem:[#allocation3 + $0x24] sm:$0xf]
    %v101 = vld [vmem:[#allocation3 + $0x28] sm:$0xf]
    %v102 = vld [vmem:[#allocation3 + $0x2c] sm:$0xf]
    %v103 = vld [vmem:[#allocation3 + $0x30] sm:$0xf]
    %v104 = vld [vmem:[#allocation3 + $0x34] sm:$0xf]
    %v105 = vld [vmem:[#allocation3 + $0x38] sm:$0xf]
    %v106 = vld [vmem:[#allocation3 + $0x3c] sm:$0xf]
    %v107 = vld [vmem:[#allocation6] sm:$0xf]
    %v108 = vld [vmem:[#allocation6 + $0x4] sm:$0xf]
    %v109 = vld [vmem:[#allocation6 + $0x8] sm:$0xf]
    %v110 = vld [vmem:[#allocation6 + $0xc] sm:$0xf]
    %v111 = vld [vmem:[#allocation6 + $0x10] sm:$0xf]
    %v112 = vld [vmem:[#allocation6 + $0x14] sm:$0xf]
    %v113 = vld [vmem:[#allocation6 + $0x18] sm:$0xf]
    %v114 = vld [vmem:[#allocation6 + $0x1c] sm:$0xf]
    %v115 = vld [vmem:[#allocation6 + $0x20] sm:$0xf]
    %v116 = vld [vmem:[#allocation6 + $0x24] sm:$0xf]
    %v117 = vld [vmem:[#allocation6 + $0x28] sm:$0xf]
    %v118 = vld [vmem:[#allocation6 + $0x2c] sm:$0xf]
    %v119 = vld [vmem:[#allocation6 + $0x30] sm:$0xf]
    %v120 = vld [vmem:[#allocation6 + $0x34] sm:$0xf]
    %v121 = vld [vmem:[#allocation6 + $0x38] sm:$0xf]
    %v122 = vld [vmem:[#allocation6 + $0x3c] sm:$0xf]
    %v123 = vld [vmem:[#allocation8] sm:$0xf]
    %v124 = vld [vmem:[#allocation8 + $0x4] sm:$0xf]
    %v125 = vld [vmem:[#allocation8 + $0x8] sm:$0xf]
    %v126 = vld [vmem:[#allocation8 + $0xc] sm:$0xf]
    %v127 = vld [vmem:[#allocation8 + $0x10] sm:$0xf]
    %v128 = vld [vmem:[#allocation8 + $0x14] sm:$0xf]
    %v129 = vld [vmem:[#allocation8 + $0x18] sm:$0xf]
    %v130 = vld [vmem:[#allocation8 + $0x1c] sm:$0xf]
    %v131 = vld [vmem:[#allocation8 + $0x20] sm:$0xf]
    %v132 = vld [vmem:[#allocation8 + $0x24] sm:$0xf]
    %v133 = vld [vmem:[#allocation8 + $0x28] sm:$0xf]
    %v134 = vld [vmem:[#allocation8 + $0x2c] sm:$0xf]
    %v135 = vld [vmem:[#allocation8 + $0x30] sm:$0xf]
    %v136 = vld [vmem:[#allocation8 + $0x34] sm:$0xf]
    %v137 = vld [vmem:[#allocation8 + $0x38] sm:$0xf]
    %v138 = vld [vmem:[#allocation8 + $0x3c] sm:$0xf]
    %v139 = vld [vmem:[#allocation9] sm:$0xf]
    %v140 = vld [vmem:[#allocation9 + $0x4] sm:$0xf]
    %v141 = vld [vmem:[#allocation9 + $0x8] sm:$0xf]
    %v142 = vld [vmem:[#allocation9 + $0xc] sm:$0xf]
    %v143 = vld [vmem:[#allocation9 + $0x10] sm:$0xf]
    %v144 = vld [vmem:[#allocation9 + $0x14] sm:$0xf]
    %v145 = vld [vmem:[#allocation9 + $0x18] sm:$0xf]
    %v146 = vld [vmem:[#allocation9 + $0x1c] sm:$0xf]
    %v147 = vld [vmem:[#allocation9 + $0x20] sm:$0xf]
    %v148 = vld [vmem:[#allocation9 + $0x24] sm:$0xf]
    %v149 = vld [vmem:[#allocation9 + $0x28] sm:$0xf]
    %v150 = vld [vmem:[#allocation9 + $0x2c] sm:$0xf]
    %v151 = vld [vmem:[#allocation9 + $0x30] sm:$0xf]
    %v152 = vld [vmem:[#allocation9 + $0x34] sm:$0xf]
    %v153 = vld [vmem:[#allocation9 + $0x38] sm:$0xf]
    %v154 = vld [vmem:[#allocation9 + $0x3c] sm:$0xf]
    %v155 = vld [vmem:[%s5] sm:$0x1]
    %v156 = vld [vmem:[%s6] sm:$0x1]
    %v157 = vld [vmem:[%s7] sm:$0x1]
    %v158 = vld [vmem:[%s8] sm:$0x1]
    %v159 = vld [vmem:[%s0] sm:$0xf]
    %v161 = vlaneseq
    %v162 = vshrl.u32 %v161, 7
    %v163 = vsub.s32 0, %v162
    %v164 = vrot.slane %v155, %v163
    %v182 = vunpack.c.l.b16 %v91
    %v183 = vunpack.c.l.b16 %v92
    %v184 = vunpack.c.l.b16 %v93
    %v185 = vunpack.c.l.b16 %v94
    %v186 = vunpack.c.l.b16 %v95
    %v187 = vunpack.c.l.b16 %v96
    %v188 = vunpack.c.l.b16 %v97
    %v189 = vunpack.c.l.b16 %v98
    %v190 = vunpack.c.l.b16 %v99
    %v191 = vunpack.c.l.b16 %v100
    %v192 = vunpack.c.l.b16 %v101
    %v193 = vunpack.c.l.b16 %v102
    %v194 = vunpack.c.l.b16 %v103
    %v195 = vunpack.c.l.b16 %v104
    %v196 = vunpack.c.l.b16 %v105
    %v197 = vunpack.c.l.b16 %v106
    %v198 = vpack.c.b16 %v183, %v182
    %v199 = vpack.c.b16 %v185, %v184
    %v200 = vpack.c.b16 %v187, %v186
    %v201 = vpack.c.b16 %v189, %v188
    %v202 = vpack.c.b16 %v191, %v190
    %v203 = vpack.c.b16 %v193, %v192
    %v204 = vpack.c.b16 %v195, %v194
    %v205 = vpack.c.b16 %v197, %v196
    %214 = vmatprep.subr.bf16.mxu0 0
    %215 = vmatpush1.bf16.msra.mxu0 %v205
    %216 = vmatprep.subr.bf16.mxu0 0
    %217 = vmatpush1.bf16.msra.mxu0 %v204
    %218 = vmatprep.subr.bf16.mxu0 0
    %219 = vmatpush1.bf16.msra.mxu0 %v203
    %220 = vmatprep.subr.bf16.mxu0 0
    %221 = vmatpush1.bf16.msra.mxu0 %v202
    %222 = vmatprep.subr.bf16.mxu0 0
    %223 = vmatpush1.bf16.msra.mxu0 %v201
    %224 = vmatprep.subr.bf16.mxu0 0
    %225 = vmatpush1.bf16.msra.mxu0 %v200
    %226 = vmatprep.subr.bf16.mxu0 0
    %227 = vmatpush1.bf16.msra.mxu0 %v199
    %228 = vmatprep.subr.bf16.mxu0 0
    %229 = vmatpush1.bf16.msra.mxu0 %v198
    %230 = vmatprep.subr.bf16.mxu0 0
    %231 = vmatpush2.bf16.msra.mxu0 0
    %232 = vmatprep.subr.bf16.mxu0 0
    %233 = vmatpush2.bf16.msra.mxu0 0
    %234 = vmatprep.subr.bf16.mxu0 0
    %235 = vmatpush2.bf16.msra.mxu0 0
    %236 = vmatprep.subr.bf16.mxu0 0
    %237 = vmatpush2.bf16.msra.mxu0 0
    %238 = vmatprep.subr.bf16.mxu0 0
    %239 = vmatpush2.bf16.msra.mxu0 0
    %240 = vmatprep.subr.bf16.mxu0 0
    %241 = vmatpush2.bf16.msra.mxu0 0
    %242 = vmatprep.subr.bf16.mxu0 0
    %243 = vmatpush2.bf16.msra.mxu0 0
    %244 = vmatprep.subr.bf16.mxu0 0
    %245 = vmatpush2.bf16.msra.mxu0 0
    %246 = vmatprep.mubr.bf16.mxu0 0
    %247 = vmatmul.mubr.bf16.gmra.mxu0 %v159
    %v248 = vpop.f32.mrf.mxu0
    %v249 = vadd.f32 %v164, %v248
    %v250 = vpop.f32.mrf.mxu0
    %v251 = vpop.f32.mrf.mxu0
    %v252 = vpop.f32.mrf.mxu0
    %253 = vdwg.mxu0
    %v254 = vmax.f32 %v249, 0.0
    %v255 = vpack.c.bf16 %v254, %v254
    %256 = vst [vmem:[#allocation2] sm:$0xf] %v255
    %v257 = vld [vmem:[#allocation2] sm:$0xf]
    %v259 = vlaneseq
    %v260 = vshrl.u32 %v259, 7
    %v261 = vsub.s32 0, %v260
    %v262 = vrot.slane %v156, %v261
    %v280 = vunpack.c.l.b16 %v123
    %v281 = vunpack.c.l.b16 %v124
    %v282 = vunpack.c.l.b16 %v125
    %v283 = vunpack.c.l.b16 %v126
    %v284 = vunpack.c.l.b16 %v127
    %v285 = vunpack.c.l.b16 %v128
    %v286 = vunpack.c.l.b16 %v129
    %v287 = vunpack.c.l.b16 %v130
    %v288 = vunpack.c.l.b16 %v131
    %v289 = vunpack.c.l.b16 %v132
    %v290 = vunpack.c.l.b16 %v133
    %v291 = vunpack.c.l.b16 %v134
    %v292 = vunpack.c.l.b16 %v135
    %v293 = vunpack.c.l.b16 %v136
    %v294 = vunpack.c.l.b16 %v137
    %v295 = vunpack.c.l.b16 %v138
    %v296 = vpack.c.b16 %v281, %v280
    %v297 = vpack.c.b16 %v283, %v282
    %v298 = vpack.c.b16 %v285, %v284
    %v299 = vpack.c.b16 %v287, %v286
    %v300 = vpack.c.b16 %v289, %v288
    %v301 = vpack.c.b16 %v291, %v290
    %v302 = vpack.c.b16 %v293, %v292
    %v303 = vpack.c.b16 %v295, %v294
    %312 = vmatprep.subr.bf16.mxu0 0
    %313 = vmatpush1.bf16.msra.mxu0 %v303
    %314 = vmatprep.subr.bf16.mxu0 0
    %315 = vmatpush1.bf16.msra.mxu0 %v302
    %316 = vmatprep.subr.bf16.mxu0 0
    %317 = vmatpush1.bf16.msra.mxu0 %v301
    %318 = vmatprep.subr.bf16.mxu0 0
    %319 = vmatpush1.bf16.msra.mxu0 %v300
    %320 = vmatprep.subr.bf16.mxu0 0
    %321 = vmatpush1.bf16.msra.mxu0 %v299
    %322 = vmatprep.subr.bf16.mxu0 0
    %323 = vmatpush1.bf16.msra.mxu0 %v298
    %324 = vmatprep.subr.bf16.mxu0 0
    %325 = vmatpush1.bf16.msra.mxu0 %v297
    %326 = vmatprep.subr.bf16.mxu0 0
    %327 = vmatpush1.bf16.msra.mxu0 %v296
    %328 = vmatprep.subr.bf16.mxu0 0
    %329 = vmatpush2.bf16.msra.mxu0 0
    %330 = vmatprep.subr.bf16.mxu0 0
    %331 = vmatpush2.bf16.msra.mxu0 0
    %332 = vmatprep.subr.bf16.mxu0 0
    %333 = vmatpush2.bf16.msra.mxu0 0
    %334 = vmatprep.subr.bf16.mxu0 0
    %335 = vmatpush2.bf16.msra.mxu0 0
    %336 = vmatprep.subr.bf16.mxu0 0
    %337 = vmatpush2.bf16.msra.mxu0 0
    %338 = vmatprep.subr.bf16.mxu0 0
    %339 = vmatpush2.bf16.msra.mxu0 0
    %340 = vmatprep.subr.bf16.mxu0 0
    %341 = vmatpush2.bf16.msra.mxu0 0
    %342 = vmatprep.subr.bf16.mxu0 0
    %343 = vmatpush2.bf16.msra.mxu0 0
    %344 = vmatprep.mubr.bf16.mxu0 0
    %345 = vmatmul.mubr.bf16.gmra.mxu0 %v257
    %v346 = vpop.f32.mrf.mxu0
    %v347 = vadd.f32 %v262, %v346
    %v348 = vpop.f32.mrf.mxu0
    %v349 = vpop.f32.mrf.mxu0
    %v350 = vpop.f32.mrf.mxu0
    %351 = vdwg.mxu0
    %v352 = vmax.f32 %v347, 0.0
    %353 = vst [vmem:[#allocation11] sm:$0xff] %v352
    %v354 = vpack.c.bf16 %v352, %v352
    %v356 = vlaneseq
    %v357 = vshrl.u32 %v356, 7
    %v358 = vsub.s32 0, %v357
    %v359 = vrot.slane %v158, %v358
    %v377 = vunpack.c.l.b16 %v139
    %v378 = vunpack.c.l.b16 %v140
    %v379 = vunpack.c.l.b16 %v141
    %v380 = vunpack.c.l.b16 %v142
    %v381 = vunpack.c.l.b16 %v143
    %v382 = vunpack.c.l.b16 %v144
    %v383 = vunpack.c.l.b16 %v145
    %v384 = vunpack.c.l.b16 %v146
    %v385 = vunpack.c.l.b16 %v147
    %v386 = vunpack.c.l.b16 %v148
    %v387 = vunpack.c.l.b16 %v149
    %v388 = vunpack.c.l.b16 %v150
    %v389 = vunpack.c.l.b16 %v151
    %v390 = vunpack.c.l.b16 %v152
    %v391 = vunpack.c.l.b16 %v153
    %v392 = vunpack.c.l.b16 %v154
    %v393 = vpack.c.b16 %v378, %v377
    %v394 = vpack.c.b16 %v380, %v379
    %v395 = vpack.c.b16 %v382, %v381
    %v396 = vpack.c.b16 %v384, %v383
    %v397 = vpack.c.b16 %v386, %v385
    %v398 = vpack.c.b16 %v388, %v387
    %v399 = vpack.c.b16 %v390, %v389
    %v400 = vpack.c.b16 %v392, %v391
    %409 = vmatprep.subr.bf16.mxu0 0
    %410 = vmatpush1.bf16.msra.mxu0 %v400
    %411 = vmatprep.subr.bf16.mxu0 0
    %412 = vmatpush1.bf16.msra.mxu0 %v399
    %413 = vmatprep.subr.bf16.mxu0 0
    %414 = vmatpush1.bf16.msra.mxu0 %v398
    %415 = vmatprep.subr.bf16.mxu0 0
    %416 = vmatpush1.bf16.msra.mxu0 %v397
    %417 = vmatprep.subr.bf16.mxu0 0
    %418 = vmatpush1.bf16.msra.mxu0 %v396
    %419 = vmatprep.subr.bf16.mxu0 0
    %420 = vmatpush1.bf16.msra.mxu0 %v395
    %421 = vmatprep.subr.bf16.mxu0 0
    %422 = vmatpush1.bf16.msra.mxu0 %v394
    %423 = vmatprep.subr.bf16.mxu0 0
    %424 = vmatpush1.bf16.msra.mxu0 %v393
    %425 = vmatprep.subr.bf16.mxu0 0
    %426 = vmatpush2.bf16.msra.mxu0 0
    %427 = vmatprep.subr.bf16.mxu0 0
    %428 = vmatpush2.bf16.msra.mxu0 0
    %429 = vmatprep.subr.bf16.mxu0 0
    %430 = vmatpush2.bf16.msra.mxu0 0
    %431 = vmatprep.subr.bf16.mxu0 0
    %432 = vmatpush2.bf16.msra.mxu0 0
    %433 = vmatprep.subr.bf16.mxu0 0
    %434 = vmatpush2.bf16.msra.mxu0 0
    %435 = vmatprep.subr.bf16.mxu0 0
    %436 = vmatpush2.bf16.msra.mxu0 0
    %437 = vmatprep.subr.bf16.mxu0 0
    %438 = vmatpush2.bf16.msra.mxu0 0
    %439 = vmatprep.subr.bf16.mxu0 0
    %440 = vmatpush2.bf16.msra.mxu0 0
    %441 = vmatprep.mubr.bf16.mxu0 0
    %442 = vmatmul.mubr.bf16.gmra.mxu0 %v354
    %v443 = vpop.f32.mrf.mxu0
    %v444 = vadd.f32 %v359, %v443
    %v445 = vpop.f32.mrf.mxu0
    %v446 = vpop.f32.mrf.mxu0
    %v447 = vpop.f32.mrf.mxu0
    %448 = vdwg.mxu0
    %v449 = vmax.f32 %v444, 0.0
    %v450 = vpack.c.bf16 %v449, %v449
    %451 = vst [vmem:[#allocation2] sm:$0xf] %v450
    %v452 = vld [vmem:[#allocation2] sm:$0xf]
    %v454 = vlaneseq
    %v455 = vshrl.u32 %v454, 7
    %v456 = vsub.s32 0, %v455
    %v457 = vrot.slane %v157, %v456
    %v475 = vunpack.c.l.b16 %v107
    %v476 = vunpack.c.l.b16 %v108
    %v477 = vunpack.c.l.b16 %v109
    %v478 = vunpack.c.l.b16 %v110
    %v479 = vunpack.c.l.b16 %v111
    %v480 = vunpack.c.l.b16 %v112
    %v481 = vunpack.c.l.b16 %v113
    %v482 = vunpack.c.l.b16 %v114
    %v483 = vunpack.c.l.b16 %v115
    %v484 = vunpack.c.l.b16 %v116
    %v485 = vunpack.c.l.b16 %v117
    %v486 = vunpack.c.l.b16 %v118
    %v487 = vunpack.c.l.b16 %v119
    %v488 = vunpack.c.l.b16 %v120
    %v489 = vunpack.c.l.b16 %v121
    %v490 = vunpack.c.l.b16 %v122
    %v491 = vpack.c.b16 %v476, %v475
    %v492 = vpack.c.b16 %v478, %v477
    %v493 = vpack.c.b16 %v480, %v479
    %v494 = vpack.c.b16 %v482, %v481
    %v495 = vpack.c.b16 %v484, %v483
    %v496 = vpack.c.b16 %v486, %v485
    %v497 = vpack.c.b16 %v488, %v487
    %v498 = vpack.c.b16 %v490, %v489
    %507 = vmatprep.subr.bf16.mxu0 0
    %508 = vmatpush1.bf16.msra.mxu0 %v498
    %509 = vmatprep.subr.bf16.mxu0 0
    %510 = vmatpush1.bf16.msra.mxu0 %v497
    %511 = vmatprep.subr.bf16.mxu0 0
    %512 = vmatpush1.bf16.msra.mxu0 %v496
    %513 = vmatprep.subr.bf16.mxu0 0
    %514 = vmatpush1.bf16.msra.mxu0 %v495
    %515 = vmatprep.subr.bf16.mxu0 0
    %516 = vmatpush1.bf16.msra.mxu0 %v494
    %517 = vmatprep.subr.bf16.mxu0 0
    %518 = vmatpush1.bf16.msra.mxu0 %v493
    %519 = vmatprep.subr.bf16.mxu0 0
    %520 = vmatpush1.bf16.msra.mxu0 %v492
    %521 = vmatprep.subr.bf16.mxu0 0
    %522 = vmatpush1.bf16.msra.mxu0 %v491
    %523 = vmatprep.subr.bf16.mxu0 0
    %524 = vmatpush2.bf16.msra.mxu0 0
    %525 = vmatprep.subr.bf16.mxu0 0
    %526 = vmatpush2.bf16.msra.mxu0 0
    %527 = vmatprep.subr.bf16.mxu0 0
    %528 = vmatpush2.bf16.msra.mxu0 0
    %529 = vmatprep.subr.bf16.mxu0 0
    %530 = vmatpush2.bf16.msra.mxu0 0
    %531 = vmatprep.subr.bf16.mxu0 0
    %532 = vmatpush2.bf16.msra.mxu0 0
    %533 = vmatprep.subr.bf16.mxu0 0
    %534 = vmatpush2.bf16.msra.mxu0 0
    %535 = vmatprep.subr.bf16.mxu0 0
    %536 = vmatpush2.bf16.msra.mxu0 0
    %537 = vmatprep.subr.bf16.mxu0 0
    %538 = vmatpush2.bf16.msra.mxu0 0
    %539 = vmatprep.mubr.bf16.mxu0 0
    %540 = vmatmul.mubr.bf16.gmra.mxu0 %v452
    %v541 = vpop.f32.mrf.mxu0
    %v542 = vadd.f32 %v457, %v541
    %v543 = vpop.f32.mrf.mxu0
    %v544 = vpop.f32.mrf.mxu0
    %v545 = vpop.f32.mrf.mxu0
    %546 = vdwg.mxu0
    %v547 = vmul.f32 %v542, 0.5
    %v548 = vtanh.pop %v547
    %v549 = vmul.f32 %v548, 0.5
    %v550 = vadd.f32 %v549, 0.5
    %v551 = vpack.c.bf16 %v550, %v550
    %552 = vst [vmem:[%s10] sm:$0xf] %v551
    // Predicated region
    $region54: #{dec_ae_forward.1} parent=1 // pred_check
      _
    $region55: #{dec_ae_forward.1} parent=1 // pred_check_branch
      %554 = sbr.rel (0) target = $region57
    $region56: #{dec_ae_forward.1} parent=1 // pred_region
      %s556 = ssub.s32 128, 128
      %557 = vsyncadd [#allocation5], %s556
      %s559 = sshll.u32 [#allocation11], 4
      %s560 = int_to_ptr.vmem [resolvable:$true] %s559
      %562 = dma.vmem_to_hbm [thread:$0]  %s560, 128, %s9, [#allocation5]
    $region57: #{dec_ae_forward.1} parent=1 // pred_fallthru
      _
    // Predicated region
    $region58: #{dec_ae_forward.1} parent=1 // pred_check
      _
    $region59: #{dec_ae_forward.1} parent=1 // pred_check_branch
      %564 = sbr.rel (0) target = $region61
    $region60: #{dec_ae_forward.1} parent=1 // pred_region
      _
    $region61: #{dec_ae_forward.1} parent=1 // pred_fallthru
      _
    // Predicated region
    $region62: #{dec_ae_forward.1} parent=1 // pred_check
      _
    $region63: #{dec_ae_forward.1} parent=1 // pred_check_branch
      %566 = sbr.rel (0) target = $region65
    $region64: #{dec_ae_forward.1} parent=1 // pred_region
      %567 = dma.done [#allocation5], 128
    $region65: #{dec_ae_forward.1} parent=1 // pred_fallthru
      _
    // Predicated region
    $region66: #{dec_ae_forward.1} parent=1 // pred_check
      _
    $region67: #{dec_ae_forward.1} parent=1 // pred_check_branch
      %569 = sbr.rel (0) target = $region69
    $region68: #{dec_ae_forward.1} parent=1 // pred_region
      _
    $region69: #{dec_ae_forward.1} parent=1 // pred_fallthru
      _
    %570 = vsyncpa [#allocation4], 1
    %571 = vsyncpa [#allocation7], 1
    %572 = vsyncpa [#allocation10], 1
    %573 = vsyncpa [#allocation5], 1

</llo_original>
